<compile_context>
chip_gen: v7x
topology: tpu7x:2x2x1
jax: 0.10.0
libtpu: 0.0.40
codegen_flags: <defaults>
</compile_context>

<pallas_src>
import functools

import jax
import jax.numpy as jnp
from jax import lax
from jax.experimental import pallas as pl
from jax.experimental.pallas import tpu as pltpu

IMAGE_SIZE = 16                       # keeps x_dim a multiple of 128
X_DIM = IMAGE_SIZE * IMAGE_SIZE * 3   # 768
Y_DIM = 1
HIDDEN = 100
HID_PAD = 128                         # hidden padded to a full lane width
MXU_ROWS = 16                         # fc1x weight padded to a full bf16 (16,128) tile
BATCH_ALIGN = 128                     # wrapper pads the batch to this


def image_network_kernel(x_ref, y_ref, w1x_ref, wcols_ref, scal_ref, o_ref):
    # x arrives as f32 straight from HBM (single pass); cast to bf16 here.
    # The VPU cast is fully hidden under the x DMA (kernel is HBM-bound).
    x = x_ref[...].astype(jnp.bfloat16)          # (BM, X_DIM)
    y = y_ref[...]                               # (1, BM) f32, batch on lanes

    # fc1x on the MXU.  w1x_ref holds the (1, X_DIM) weight in row 0 and zero
    # padding in rows 1..15; the NT dot (contract both last dims) puts the
    # batch on the lane axis of the result.
    s = lax.dot_general(
        w1x_ref[...], x,
        dimension_numbers=(((1,), (1,)), ((), ())),
        preferred_element_type=jnp.float32)      # (MXU_ROWS, BM)
    hx = jnp.maximum(s[0:1, :], 0.0)             # (1, BM)

    # fc1y: scalar weight/bias read from SMEM.
    w1y = scal_ref[0]
    b1y = scal_ref[1]
    b3 = scal_ref[2]
    hy = jnp.maximum(y * w1y + b1y, 0.0)         # (1, BM)

    # fc2 on cat([hx, hy]):
    #   h2[j, b] = relu(W2[j,0]*hx[b] + W2[j,1]*hy[b] + b2[j])
    # expressed as outer-product broadcasts (hidden on sublanes, batch on lanes).
    wcols = wcols_ref[...]                       # (HID_PAD, 4) f32, zero padded
    w2a = wcols[:, 0:1]                          # W2[:, 0]    (HID_PAD, 1)
    w2b = wcols[:, 1:2]                          # W2[:, 1]
    b2 = wcols[:, 2:3]                           # fc2 bias
    w3 = wcols[:, 3:4]                           # fc3 weight
    h2 = jnp.maximum(w2a * hx + w2b * hy + b2, 0.0)       # (HID_PAD, BM)

    # fc3: sublane reduction over the (zero padded) hidden axis.
    out = jnp.sum(w3 * h2, axis=0, keepdims=True) + b3    # (1, BM)
    o_ref[...] = out.astype(o_ref.dtype)


def _pick_bm(batch):
    """batch is already a multiple of 128."""
    candidates = (4096, 2048, 1024, 512, 256, 128)
    # Prefer a large tile with an EVEN number of grid steps: v7x megacore
    # shards the 'parallel' axis across 2 TCs, an odd count gives a 2:1 skew.
    # bm <= 4096 keeps double-buffered f32 x (~24 MiB) + f32 hidden temps well
    # under v7x's 64 MiB per-TC VMEM.
    for bm in candidates:
        if bm >= 2048 and batch % bm == 0 and (batch // bm) % 2 == 0:
            return bm
    # Otherwise the single biggest tile that divides the batch (fewest serial
    # grid steps -- best for v5e/v6e's single TensorCore).
    for bm in candidates:
        if batch % bm == 0:
            return bm
    raise ValueError("padded batch size must be a multiple of 128")


def pack_params(params):
    """PyTorch-shaped params -> kernel layout. Call ONCE, outside the hot path."""
    w1x = jnp.zeros((MXU_ROWS, X_DIM), jnp.bfloat16)
    w1x = w1x.at[0].set(params["fc1x_w"][0].astype(jnp.bfloat16))
    wcols = jnp.zeros((HID_PAD, 4), jnp.float32)
    wcols = wcols.at[:HIDDEN, 0].set(params["fc2_w"][:, 0])
    wcols = wcols.at[:HIDDEN, 1].set(params["fc2_w"][:, 1])
    wcols = wcols.at[:HIDDEN, 2].set(params["fc2_b"])
    wcols = wcols.at[:HIDDEN, 3].set(params["fc3_w"][0])
    scal = jnp.array(
        [params["fc1y_w"][0, 0], params["fc1y_b"][0], params["fc3_b"][0]],
        jnp.float32)
    return w1x, wcols, scal


def image_network(x, y, packed, *, bm=None):
    """x: (B, X_DIM) f32, y: (B, 1) f32, packed = pack_params(params) -> (B, 1) f32."""
    w1x, wcols, scal = packed
    B = x.shape[0]
    B_pad = ((B + BATCH_ALIGN - 1) // BATCH_ALIGN) * BATCH_ALIGN
    if B_pad != B:
        x = jnp.pad(x, ((0, B_pad - B), (0, 0)))
        y = jnp.pad(y, ((0, B_pad - B), (0, 0)))
    if bm is None:
        bm = _pick_bm(B_pad)
    assert B_pad % bm == 0, "padded batch must be divisible by the batch tile"

    x = x.astype(jnp.float32)                       # streamed f32 (no extra pass)
    y_row = y.reshape(1, B_pad).astype(jnp.float32) # lane-dense y

    grid = (B_pad // bm,)
    # Raise the scoped VMEM budget for big tiles; 56 MiB keeps headroom on
    # v7x (64 MiB/TC) and is far under v5e/v6e's 128 MiB.
    vmem_limit = (56 if bm >= 2048 else 32) * 1024 * 1024
    cost = pl.CostEstimate(
        flops=2 * B_pad * X_DIM + 6 * B_pad * HID_PAD,
        transcendentals=0,
        bytes_accessed=int(x.size * 4 + 2 * B_pad * 4 + w1x.size * 2
                           + wcols.size * 4 + scal.size * 4),
    )

    out_row = pl.pallas_call(
        image_network_kernel,
        out_shape=jax.ShapeDtypeStruct((1, B_pad), jnp.float32),
        grid_spec=pltpu.PrefetchScalarGridSpec(
            num_scalar_prefetch=0,
            grid=grid,
            in_specs=[
                pl.BlockSpec((bm, X_DIM), lambda i: (i, 0)),        # x tile (f32)
                pl.BlockSpec((1, bm), lambda i: (0, i)),            # y (lane-dense)
                pl.BlockSpec((MXU_ROWS, X_DIM), lambda i: (0, 0)),  # fc1x weight (bf16, padded)
                pl.BlockSpec((HID_PAD, 4), lambda i: (0, 0)),       # fc2/fc3 weight columns
                pl.BlockSpec(memory_space=pltpu.MemorySpace.SMEM),  # scalar params
            ],
            out_specs=pl.BlockSpec((1, bm), lambda i: (0, i)),      # lane-dense output
        ),
        compiler_params=pltpu.CompilerParams(
            dimension_semantics=("parallel",),
            vmem_limit_bytes=vmem_limit),
        cost_estimate=cost,
    )(x, y_row, w1x, wcols, scal)

    return out_row.reshape(B_pad, 1)[:B]


def init_params(key):
    """Deterministic synthetic parameters in native PyTorch nn.Linear shapes."""
    ks = jax.random.split(key, 7)
    return dict(
        fc1x_w=jax.random.normal(ks[0], (1, X_DIM), jnp.float32) * 0.02,  # Linear(x_dim, 1, bias=False)
        fc1y_w=jax.random.normal(ks[1], (1, 1), jnp.float32),             # Linear(1, 1)
        fc1y_b=jax.random.normal(ks[2], (1,), jnp.float32) * 0.1,
        fc2_w=jax.random.normal(ks[3], (HIDDEN, 2), jnp.float32) * 0.5,   # Linear(2, 100)
        fc2_b=jax.random.normal(ks[4], (HIDDEN,), jnp.float32) * 0.1,
        fc3_w=jax.random.normal(ks[5], (1, HIDDEN), jnp.float32) * 0.1,   # Linear(100, 1)
        fc3_b=jax.random.normal(ks[6], (1,), jnp.float32) * 0.1,
    )


def reference(x, y, params):
    """Pure-JAX forward matching the PyTorch module.  fc1x inputs are rounded
    to bf16 (the kernel casts x to bf16 inside, on the MXU path) with f32
    accumulation; fc1y/fc2/fc3 are plain f32."""
    xb = x.astype(jnp.bfloat16).astype(jnp.float32)
    w1x = params["fc1x_w"].astype(jnp.bfloat16).astype(jnp.float32)
    hx = jax.nn.relu(xb @ w1x.T)
    hy = jax.nn.relu(y @ params["fc1y_w"].T + params["fc1y_b"])
    h = jnp.concatenate([hx, hy], axis=1)
    h = jax.nn.relu(h @ params["fc2_w"].T + params["fc2_b"])
    return h @ params["fc3_w"].T + params["fc3_b"]


if __name__ == "__main__":
    key = jax.random.PRNGKey(0)
    kx, ky, kp = jax.random.split(key, 3)
    B = 512                                   # small demo batch
    x = jax.random.normal(kx, (B, X_DIM), jnp.float32)
    y = jax.random.normal(ky, (B, Y_DIM), jnp.float32)
    params = init_params(kp)

    packed = pack_params(params)              # hoisted out of the per-call path
    fwd = jax.jit(functools.partial(image_network, packed=packed))

    out = jax.block_until_ready(fwd(x, y))

    ref = reference(x, y, params)
    assert out.shape == (B, 1)
    max_err = float(jnp.max(jnp.abs(out - ref)))
    assert jnp.allclose(out, ref, atol=1e-3, rtol=1e-3), (
        f"mismatch vs JAX reference, max abs err = {max_err}")
    print("KERNEL_OK")
</pallas_src>

<mosaic_0001>
module attributes {stable_mosaic.version = 11 : i64} {
  func.func @image_network_kernel(%arg0: i32, %arg1: memref<512x768xf32, #tpu.memory_space<vmem>>, %arg2: memref<1x512xf32, #tpu.memory_space<vmem>>, %arg3: memref<16x768xbf16, #tpu.memory_space<vmem>>, %arg4: memref<128x4xf32, #tpu.memory_space<vmem>>, %arg5: memref<3xf32, #tpu.memory_space<smem>>, %arg6: memref<1x512xf32, #tpu.memory_space<vmem>>) attributes {dimension_semantics = [#tpu.dimension_semantics<parallel>], iteration_bounds = array<i64: 1>, scalar_prefetch = 0 : i64, scratch_operands = 0 : i64, tpu.core_type = #tpu.core_type<tc>, window_params = [{transform_indices = @transform_0, window_bounds = array<i64: 512, 768>}, {transform_indices = @transform_1, window_bounds = array<i64: 1, 512>}, {pipeline_mode = #tpu.pipeline_mode<synchronous>, transform_indices = @transform_2, window_bounds = array<i64: 16, 768>}, {pipeline_mode = #tpu.pipeline_mode<synchronous>, transform_indices = @transform_3, window_bounds = array<i64: 128, 4>}, {transform_indices = @transform_4, window_bounds = array<i64: 3>}, {transform_indices = @transform_5, window_bounds = array<i64: 1, 512>}]} {
    %c0 = arith.constant 0 : index
    %c0_0 = arith.constant 0 : index
    %0 = vector.load %arg1[%c0, %c0_0] : memref<512x768xf32, #tpu.memory_space<vmem>>, vector<512x768xf32>
    %1 = arith.truncf %0 : vector<512x768xf32> to vector<512x768xbf16>
    %c0_1 = arith.constant 0 : index
    %c0_2 = arith.constant 0 : index
    %2 = vector.load %arg2[%c0_1, %c0_2] : memref<1x512xf32, #tpu.memory_space<vmem>>, vector<1x512xf32>
    %c0_3 = arith.constant 0 : index
    %c0_4 = arith.constant 0 : index
    %3 = vector.load %arg3[%c0_3, %c0_4] : memref<16x768xbf16, #tpu.memory_space<vmem>>, vector<16x768xbf16>
    %cst = arith.constant dense<0.000000e+00> : vector<16x512xf32>
    %4 = tpu.matmul %3, %1, %cst {dimension_numbers = #tpu.dot_dimension_numbers<[1], [1], [0], [0], [0, 0, 1, 0], [], []>} : vector<16x768xbf16>, vector<512x768xbf16>, vector<16x512xf32> -> vector<16x512xf32>
    %5 = vector.extract_strided_slice %4 {offsets = [0, 0], sizes = [1, 512], strides = [1, 1]} : vector<16x512xf32> to vector<1x512xf32>
    %cst_5 = arith.constant 0.000000e+00 : f32
    %6 = vector.broadcast %cst_5 : f32 to vector<1x512xf32>
    %7 = arith.maximumf %5, %6 : vector<1x512xf32>
    %c0_6 = arith.constant 0 : index
    %8 = memref.load %arg5[%c0_6] : memref<3xf32, #tpu.memory_space<smem>>
    %c1 = arith.constant 1 : index
    %9 = memref.load %arg5[%c1] : memref<3xf32, #tpu.memory_space<smem>>
    %c2 = arith.constant 2 : index
    %10 = memref.load %arg5[%c2] : memref<3xf32, #tpu.memory_space<smem>>
    %11 = vector.broadcast %8 : f32 to vector<1x512xf32>
    %12 = arith.mulf %2, %11 : vector<1x512xf32>
    %13 = vector.broadcast %9 : f32 to vector<1x512xf32>
    %14 = arith.addf %12, %13 : vector<1x512xf32>
    %cst_7 = arith.constant 0.000000e+00 : f32
    %15 = vector.broadcast %cst_7 : f32 to vector<1x512xf32>
    %16 = arith.maximumf %14, %15 : vector<1x512xf32>
    %c0_8 = arith.constant 0 : index
    %c0_9 = arith.constant 0 : index
    %17 = vector.load %arg4[%c0_8, %c0_9] : memref<128x4xf32, #tpu.memory_space<vmem>>, vector<128x4xf32>
    %18 = vector.extract_strided_slice %17 {offsets = [0, 0], sizes = [128, 1], strides = [1, 1]} : vector<128x4xf32> to vector<128x1xf32>
    %19 = vector.extract_strided_slice %17 {offsets = [0, 1], sizes = [128, 1], strides = [1, 1]} : vector<128x4xf32> to vector<128x1xf32>
    %20 = vector.extract_strided_slice %17 {offsets = [0, 2], sizes = [128, 1], strides = [1, 1]} : vector<128x4xf32> to vector<128x1xf32>
    %21 = vector.extract_strided_slice %17 {offsets = [0, 3], sizes = [128, 1], strides = [1, 1]} : vector<128x4xf32> to vector<128x1xf32>
    %22 = vector.broadcast %18 : vector<128x1xf32> to vector<128x512xf32>
    %23 = vector.broadcast %7 : vector<1x512xf32> to vector<128x512xf32>
    %24 = arith.mulf %22, %23 : vector<128x512xf32>
    %25 = vector.broadcast %19 : vector<128x1xf32> to vector<128x512xf32>
    %26 = vector.broadcast %16 : vector<1x512xf32> to vector<128x512xf32>
    %27 = arith.mulf %25, %26 : vector<128x512xf32>
    %28 = arith.addf %24, %27 : vector<128x512xf32>
    %29 = vector.broadcast %20 : vector<128x1xf32> to vector<128x512xf32>
    %30 = arith.addf %28, %29 : vector<128x512xf32>
    %cst_10 = arith.constant 0.000000e+00 : f32
    %31 = vector.broadcast %cst_10 : f32 to vector<128x512xf32>
    %32 = arith.maximumf %30, %31 : vector<128x512xf32>
    %33 = vector.broadcast %21 : vector<128x1xf32> to vector<128x512xf32>
    %34 = arith.mulf %33, %32 : vector<128x512xf32>
    %cst_11 = arith.constant dense<0.000000e+00> : vector<512xf32>
    %35 = vector.multi_reduction <add>, %34, %cst_11 [0] : vector<128x512xf32> to vector<512xf32>
    %36 = vector.shape_cast %35 : vector<512xf32> to vector<1x512xf32>
    %37 = vector.broadcast %10 : f32 to vector<1x512xf32>
    %38 = arith.addf %36, %37 : vector<1x512xf32>
    %c0_12 = arith.constant 0 : index
    %c0_13 = arith.constant 0 : index
    %39 = vector.load %arg6[%c0_12, %c0_13] : memref<1x512xf32, #tpu.memory_space<vmem>>, vector<1x512xf32>
    tpu.vector_store %arg6[%c0_12, %c0_13], %38 {strides = array<i32>} : memref<1x512xf32, #tpu.memory_space<vmem>>, vector<1x512xf32>,
    return
  }
  func.func @transform_0(%arg0: i32) -> (i32, i32) {
    %c0_i32 = arith.constant 0 : i32
    %c0_i32_0 = arith.constant 0 : i32
    return %arg0, %c0_i32 : i32, i32
  }
  func.func @transform_1(%arg0: i32) -> (i32, i32) {
    %c0_i32 = arith.constant 0 : i32
    %c0_i32_0 = arith.constant 0 : i32
    return %c0_i32, %arg0 : i32, i32
  }
  func.func @transform_2(%arg0: i32) -> (i32, i32) {
    %c0_i32 = arith.constant 0 : i32
    %c0_i32_0 = arith.constant 0 : i32
    %c0_i32_1 = arith.constant 0 : i32
    return %c0_i32, %c0_i32_0 : i32, i32
  }
  func.func @transform_3(%arg0: i32) -> (i32, i32) {
    %c0_i32 = arith.constant 0 : i32
    %c0_i32_0 = arith.constant 0 : i32
    %c0_i32_1 = arith.constant 0 : i32
    return %c0_i32, %c0_i32_0 : i32, i32
  }
  func.func @transform_4(%arg0: i32) -> i32 {
    %c0_i32 = arith.constant 0 : i32
    %c0_i32_0 = arith.constant 0 : i32
    return %c0_i32 : i32
  }
  func.func @transform_5(%arg0: i32) -> (i32, i32) {
    %c0_i32 = arith.constant 0 : i32
    %c0_i32_0 = arith.constant 0 : i32
    return %c0_i32, %arg0 : i32, i32
  }
}

</mosaic_0001>

<llo_original>
// kernel: image_network.1
$region0: #{image_network.1}
  #allocation0 [shape = 'u32[]', space=smem, size = 0x4, offset = 0x4, fixed_abs, tag = 'smem constant byte address 0x4 - core index']
  #allocation1 [shape = 'u32[144,128]{1,0:T(1,128)}', space=vmem, size = 0x12000, scoped, tag = 'internal scratch']
  %s0 = inlined_call_operand.hbm [shape: f32[512,768], index: 0, kind: input, shape index: {}]
  %s1 = inlined_call_operand.hbm [shape: f32[1,512], index: 1, kind: input, shape index: {}]
  %s2 = inlined_call_operand.vmem [shape: bf16[16,768], index: 2, kind: input, shape index: {}]
  %s3 = inlined_call_operand.hbm [shape: f32[128,4], index: 3, kind: input, shape index: {}]
  %s4 = inlined_call_operand.hbm [shape: f32[3], index: 4, kind: input, shape index: {}]
  %s5 = inlined_call_operand.hbm [shape: f32[1,512], index: 5, kind: output, shape index: {}]
  %s6 = sld [smem:[#allocation0]]
  $region46: #{image_network.1} parent=0
    _
  %s8 = ssub.s32 1, %s6
  %s9 = scalar_select 0, %s8, %s6
  $region1: #{image_network.1} parent=0
    #allocation2 [shape = 'u8[1572864]{0}', space=vmem, size = 0x180000, scoped, tag = 'input window, operand 0, single buffered']
    #allocation3 [shape = 's32[1]{0}', space=sflag, size = 0x4, scoped, tag = 'scoped memory for image_network.1']
    #allocation4 [shape = 's32[1]{0}', space=sflag, size = 0x4, scoped, tag = 'scoped memory for image_network.1']
    #allocation5 [shape = 's32[1]{0}', space=sflag, size = 0x4, scoped, tag = 'scoped memory for image_network.1']
    #allocation6 [shape = 'u8[2048]{0}', space=vmem, size = 0x800, scoped, tag = 'input window, operand 1, single buffered']
    #allocation7 [shape = 's32[1]{0}', space=sflag, size = 0x4, scoped, tag = 'scoped memory for image_network.1']
    #allocation8 [shape = 'u8[65536]{0}', space=vmem, size = 0x10000, scoped, tag = 'input window, operand 3, single buffered']
    #allocation9 [shape = 'u8[512]{0}', space=smem, size = 0x200, scoped, tag = 'input window, operand 4, single buffered']
    #allocation10 [shape = 'u8[2048]{0}', space=vmem, size = 0x800, scoped, tag = 'output window, operand 0, single buffered']
    %10 = vsyncpa [#allocation3], 0
    %11 = vsyncpa [#allocation7], 0
    %12 = vsyncpa [#allocation5], 0
    %13 = vsyncpa [#allocation4], 0
    // Predicated region
    $region2: #{image_network.1} parent=1 // pred_check
      _
    $region3: #{image_network.1} parent=1 // pred_check_branch
      %15 = sbr.rel (0) target = $region5
    $region4: #{image_network.1} parent=1 // pred_region
      %s17 = ssub.s32 49152, 49152
      %18 = vsyncadd [#allocation3], %s17
      %s19 = sshll.u32 [#allocation2], 4
      %s20 = int_to_ptr.vmem [resolvable:$true] %s19
      %25 = dma.hbm_to_vmem [thread:$0]  %s0, 49152, %s20, [#allocation3], 768, 768, 48
    $region5: #{image_network.1} parent=1 // pred_fallthru
      _
    // Predicated region
    $region6: #{image_network.1} parent=1 // pred_check
      _
    $region7: #{image_network.1} parent=1 // pred_check_branch
      %27 = sbr.rel (0) target = $region9
    $region8: #{image_network.1} parent=1 // pred_region
      %s29 = ssub.s32 64, 64
      %30 = vsyncadd [#allocation7], %s29
      %s32 = sshll.u32 [#allocation6], 4
      %s33 = int_to_ptr.vmem [resolvable:$true] %s32
      %35 = dma.hbm_to_vmem [thread:$0]  %s1, 64, %s33, [#allocation7]
    $region9: #{image_network.1} parent=1 // pred_fallthru
      _
    // Predicated region
    $region10: #{image_network.1} parent=1 // pred_check
      _
    $region11: #{image_network.1} parent=1 // pred_check_branch
      %37 = sbr.rel (0) target = $region13
    $region12: #{image_network.1} parent=1 // pred_region
      _
    $region13: #{image_network.1} parent=1 // pred_fallthru
      _
    // Predicated region
    $region14: #{image_network.1} parent=1 // pred_check
      _
    $region15: #{image_network.1} parent=1 // pred_check_branch
      %39 = sbr.rel (0) target = $region17
    $region16: #{image_network.1} parent=1 // pred_region
      %s41 = ssub.s32 2048, 2048
      %42 = vsyncadd [#allocation7], %s41
      %s43 = sshll.u32 [#allocation8], 4
      %s44 = int_to_ptr.vmem [resolvable:$true] %s43
      %49 = dma.hbm_to_vmem [thread:$0]  %s3, 2048, %s44, [#allocation7], 128, 128, 8
    $region17: #{image_network.1} parent=1 // pred_fallthru
      _
    // Predicated region
    $region18: #{image_network.1} parent=1 // pred_check
      _
    $region19: #{image_network.1} parent=1 // pred_check_branch
      %51 = sbr.rel (0) target = $region21
    $region20: #{image_network.1} parent=1 // pred_region
      %s53 = ssub.s32 16, 16
      %54 = vsyncadd [#allocation5], %s53
      %57 = dma.hbm_to_smem %s4, 16, [#allocation9], [#allocation5]
    $region21: #{image_network.1} parent=1 // pred_fallthru
      _
    // Predicated region
    $region22: #{image_network.1} parent=1 // pred_check
      _
    $region23: #{image_network.1} parent=1 // pred_check_branch
      %59 = sbr.rel (0) target = $region25
    $region24: #{image_network.1} parent=1 // pred_region
      %60 = dma.done [#allocation3], 49152
    $region25: #{image_network.1} parent=1 // pred_fallthru
      _
    // Predicated region
    $region26: #{image_network.1} parent=1 // pred_check
      _
    $region27: #{image_network.1} parent=1 // pred_check_branch
      %62 = sbr.rel (0) target = $region29
    $region28: #{image_network.1} parent=1 // pred_region
      %63 = dma.done [#allocation7], 64
    $region29: #{image_network.1} parent=1 // pred_fallthru
      _
    // Predicated region
    $region30: #{image_network.1} parent=1 // pred_check
      _
    $region31: #{image_network.1} parent=1 // pred_check_branch
      %65 = sbr.rel (0) target = $region33
    $region32: #{image_network.1} parent=1 // pred_region
      %66 = dma.done [#allocation7], 2048
    $region33: #{image_network.1} parent=1 // pred_fallthru
      _
    // Predicated region
    $region34: #{image_network.1} parent=1 // pred_check
      _
    $region35: #{image_network.1} parent=1 // pred_check_branch
      %68 = sbr.rel (0) target = $region37
    $region36: #{image_network.1} parent=1 // pred_region
      %69 = dma.done [#allocation5], 16
    $region37: #{image_network.1} parent=1 // pred_fallthru
      _
    %70 = sfence
    %v71 = vld [vmem:[#allocation2] sm:$0xff]
    %v72 = vld [vmem:[#allocation2 + $0x8] sm:$0xff]
    %v73 = vld [vmem:[#allocation2 + $0x10] sm:$0xff]
    %v74 = vld [vmem:[#allocation2 + $0x18] sm:$0xff]
    %v75 = vld [vmem:[#allocation2 + $0x20] sm:$0xff]
    %v76 = vld [vmem:[#allocation2 + $0x28] sm:$0xff]
    %v77 = vld [vmem:[#allocation2 + $0x30] sm:$0xff]
    %v78 = vld [vmem:[#allocation2 + $0x38] sm:$0xff]
    %v79 = vld [vmem:[#allocation2 + $0x40] sm:$0xff]
    %v80 = vld [vmem:[#allocation2 + $0x48] sm:$0xff]
    %v81 = vld [vmem:[#allocation2 + $0x50] sm:$0xff]
    %v82 = vld [vmem:[#allocation2 + $0x58] sm:$0xff]
    %v83 = vld [vmem:[#allocation2 + $0x60] sm:$0xff]
    %v84 = vld [vmem:[#allocation2 + $0x68] sm:$0xff]
    %v85 = vld [vmem:[#allocation2 + $0x70] sm:$0xff]
    %v86 = vld [vmem:[#allocation2 + $0x78] sm:$0xff]
    %v87 = vld [vmem:[#allocation2 + $0x80] sm:$0xff]
    %v88 = vld [vmem:[#allocation2 + $0x88] sm:$0xff]
    %v89 = vld [vmem:[#allocation2 + $0x90] sm:$0xff]
    %v90 = vld [vmem:[#allocation2 + $0x98] sm:$0xff]
    %v91 = vld [vmem:[#allocation2 + $0xa0] sm:$0xff]
    %v92 = vld [vmem:[#allocation2 + $0xa8] sm:$0xff]
    %v93 = vld [vmem:[#allocation2 + $0xb0] sm:$0xff]
    %v94 = vld [vmem:[#allocation2 + $0xb8] sm:$0xff]
    %v95 = vld [vmem:[#allocation2 + $0xc0] sm:$0xff]
    %v96 = vld [vmem:[#allocation2 + $0xc8] sm:$0xff]
    %v97 = vld [vmem:[#allocation2 + $0xd0] sm:$0xff]
    %v98 = vld [vmem:[#allocation2 + $0xd8] sm:$0xff]
    %v99 = vld [vmem:[#allocation2 + $0xe0] sm:$0xff]
    %v100 = vld [vmem:[#allocation2 + $0xe8] sm:$0xff]
    %v101 = vld [vmem:[#allocation2 + $0xf0] sm:$0xff]
    %v102 = vld [vmem:[#allocation2 + $0xf8] sm:$0xff]
    %v103 = vld [vmem:[#allocation2 + $0x100] sm:$0xff]
    %v104 = vld [vmem:[#allocation2 + $0x108] sm:$0xff]
    %v105 = vld [vmem:[#allocation2 + $0x110] sm:$0xff]
    %v106 = vld [vmem:[#allocation2 + $0x118] sm:$0xff]
    %v107 = vld [vmem:[#allocation2 + $0x120] sm:$0xff]
    %v108 = vld [vmem:[#allocation2 + $0x128] sm:$0xff]
    %v109 = vld [vmem:[#allocation2 + $0x130] sm:$0xff]
    %v110 = vld [vmem:[#allocation2 + $0x138] sm:$0xff]
    %v111 = vld [vmem:[#allocation2 + $0x140] sm:$0xff]
    %v112 = vld [vmem:[#allocation2 + $0x148] sm:$0xff]
    %v113 = vld [vmem:[#allocation2 + $0x150] sm:$0xff]
    %v114 = vld [vmem:[#allocation2 + $0x158] sm:$0xff]
    %v115 = vld [vmem:[#allocation2 + $0x160] sm:$0xff]
    %v116 = vld [vmem:[#allocation2 + $0x168] sm:$0xff]
    %v117 = vld [vmem:[#allocation2 + $0x170] sm:$0xff]
    %v118 = vld [vmem:[#allocation2 + $0x178] sm:$0xff]
    %v119 = vld [vmem:[#allocation2 + $0x180] sm:$0xff]
    %v120 = vld [vmem:[#allocation2 + $0x188] sm:$0xff]
    %v121 = vld [vmem:[#allocation2 + $0x190] sm:$0xff]
    %v122 = vld [vmem:[#allocation2 + $0x198] sm:$0xff]
    %v123 = vld [vmem:[#allocation2 + $0x1a0] sm:$0xff]
    %v124 = vld [vmem:[#allocation2 + $0x1a8] sm:$0xff]
    %v125 = vld [vmem:[#allocation2 + $0x1b0] sm:$0xff]
    %v126 = vld [vmem:[#allocation2 + $0x1b8] sm:$0xff]
    %v127 = vld [vmem:[#allocation2 + $0x1c0] sm:$0xff]
    %v128 = vld [vmem:[#allocation2 + $0x1c8] sm:$0xff]
    %v129 = vld [vmem:[#allocation2 + $0x1d0] sm:$0xff]
    %v130 = vld [vmem:[#allocation2 + $0x1d8] sm:$0xff]
    %v131 = vld [vmem:[#allocation2 + $0x1e0] sm:$0xff]
    %v132 = vld [vmem:[#allocation2 + $0x1e8] sm:$0xff]
    %v133 = vld [vmem:[#allocation2 + $0x1f0] sm:$0xff]
    %v134 = vld [vmem:[#allocation2 + $0x1f8] sm:$0xff]
    %v135 = vld [vmem:[#allocation2 + $0x200] sm:$0xff]
    %v136 = vld [vmem:[#allocation2 + $0x208] sm:$0xff]
    %v137 = vld [vmem:[#allocation2 + $0x210] sm:$0xff]
    %v138 = vld [vmem:[#allocation2 + $0x218] sm:$0xff]
    %v139 = vld [vmem:[#allocation2 + $0x220] sm:$0xff]
    %v140 = vld [vmem:[#allocation2 + $0x228] sm:$0xff]
    %v141 = vld [vmem:[#allocation2 + $0x230] sm:$0xff]
    %v142 = vld [vmem:[#allocation2 + $0x238] sm:$0xff]
    %v143 = vld [vmem:[#allocation2 + $0x240] sm:$0xff]
    %v144 = vld [vmem:[#allocation2 + $0x248] sm:$0xff]
    %v145 = vld [vmem:[#allocation2 + $0x250] sm:$0xff]
    %v146 = vld [vmem:[#allocation2 + $0x258] sm:$0xff]
    %v147 = vld [vmem:[#allocation2 + $0x260] sm:$0xff]
    %v148 = vld [vmem:[#allocation2 + $0x268] sm:$0xff]
    %v149 = vld [vmem:[#allocation2 + $0x270] sm:$0xff]
    %v150 = vld [vmem:[#allocation2 + $0x278] sm:$0xff]
    %v151 = vld [vmem:[#allocation2 + $0x280] sm:$0xff]
    %v152 = vld [vmem:[#allocation2 + $0x288] sm:$0xff]
    %v153 = vld [vmem:[#allocation2 + $0x290] sm:$0xff]
    %v154 = vld [vmem:[#allocation2 + $0x298] sm:$0xff]
    %v155 = vld [vmem:[#allocation2 + $0x2a0] sm:$0xff]
    %v156 = vld [vmem:[#allocation2 + $0x2a8] sm:$0xff]
    %v157 = vld [vmem:[#allocation2 + $0x2b0] sm:$0xff]
    %v158 = vld [vmem:[#allocation2 + $0x2b8] sm:$0xff]
    %v159 = vld [vmem:[#allocation2 + $0x2c0] sm:$0xff]
    %v160 = vld [vmem:[#allocation2 + $0x2c8] sm:$0xff]
    %v161 = vld [vmem:[#allocation2 + $0x2d0] sm:$0xff]
    %v162 = vld [vmem:[#allocation2 + $0x2d8] sm:$0xff]
    %v163 = vld [vmem:[#allocation2 + $0x2e0] sm:$0xff]
    %v164 = vld [vmem:[#allocation2 + $0x2e8] sm:$0xff]
    %v165 = vld [vmem:[#allocation2 + $0x2f0] sm:$0xff]
    %v166 = vld [vmem:[#allocation2 + $0x2f8] sm:$0xff]
    %v167 = vld [vmem:[#allocation2 + $0x300] sm:$0xff]
    %v168 = vld [vmem:[#allocation2 + $0x308] sm:$0xff]
    %v169 = vld [vmem:[#allocation2 + $0x310] sm:$0xff]
    %v170 = vld [vmem:[#allocation2 + $0x318] sm:$0xff]
    %v171 = vld [vmem:[#allocation2 + $0x320] sm:$0xff]
    %v172 = vld [vmem:[#allocation2 + $0x328] sm:$0xff]
    %v173 = vld [vmem:[#allocation2 + $0x330] sm:$0xff]
    %v174 = vld [vmem:[#allocation2 + $0x338] sm:$0xff]
    %v175 = vld [vmem:[#allocation2 + $0x340] sm:$0xff]
    %v176 = vld [vmem:[#allocation2 + $0x348] sm:$0xff]
    %v177 = vld [vmem:[#allocation2 + $0x350] sm:$0xff]
    %v178 = vld [vmem:[#allocation2 + $0x358] sm:$0xff]
    %v179 = vld [vmem:[#allocation2 + $0x360] sm:$0xff]
    %v180 = vld [vmem:[#allocation2 + $0x368] sm:$0xff]
    %v181 = vld [vmem:[#allocation2 + $0x370] sm:$0xff]
    %v182 = vld [vmem:[#allocation2 + $0x378] sm:$0xff]
    %v183 = vld [vmem:[#allocation2 + $0x380] sm:$0xff]
    %v184 = vld [vmem:[#allocation2 + $0x388] sm:$0xff]
    %v185 = vld [vmem:[#allocation2 + $0x390] sm:$0xff]
    %v186 = vld [vmem:[#allocation2 + $0x398] sm:$0xff]
    %v187 = vld [vmem:[#allocation2 + $0x3a0] sm:$0xff]
    %v188 = vld [vmem:[#allocation2 + $0x3a8] sm:$0xff]
    %v189 = vld [vmem:[#allocation2 + $0x3b0] sm:$0xff]
    %v190 = vld [vmem:[#allocation2 + $0x3b8] sm:$0xff]
    %v191 = vld [vmem:[#allocation2 + $0x3c0] sm:$0xff]
    %v192 = vld [vmem:[#allocation2 + $0x3c8] sm:$0xff]
    %v193 = vld [vmem:[#allocation2 + $0x3d0] sm:$0xff]
    %v194 = vld [vmem:[#allocation2 + $0x3d8] sm:$0xff]
    %v195 = vld [vmem:[#allocation2 + $0x3e0] sm:$0xff]
    %v196 = vld [vmem:[#allocation2 + $0x3e8] sm:$0xff]
    %v197 = vld [vmem:[#allocation2 + $0x3f0] sm:$0xff]
    %v198 = vld [vmem:[#allocation2 + $0x3f8] sm:$0xff]
    %v199 = vld [vmem:[#allocation2 + $0x400] sm:$0xff]
    %v200 = vld [vmem:[#allocation2 + $0x408] sm:$0xff]
    %v201 = vld [vmem:[#allocation2 + $0x410] sm:$0xff]
    %v202 = vld [vmem:[#allocation2 + $0x418] sm:$0xff]
    %v203 = vld [vmem:[#allocation2 + $0x420] sm:$0xff]
    %v204 = vld [vmem:[#allocation2 + $0x428] sm:$0xff]
    %v205 = vld [vmem:[#allocation2 + $0x430] sm:$0xff]
    %v206 = vld [vmem:[#allocation2 + $0x438] sm:$0xff]
    %v207 = vld [vmem:[#allocation2 + $0x440] sm:$0xff]
    %v208 = vld [vmem:[#allocation2 + $0x448] sm:$0xff]
    %v209 = vld [vmem:[#allocation2 + $0x450] sm:$0xff]
    %v210 = vld [vmem:[#allocation2 + $0x458] sm:$0xff]
    %v211 = vld [vmem:[#allocation2 + $0x460] sm:$0xff]
    %v212 = vld [vmem:[#allocation2 + $0x468] sm:$0xff]
    %v213 = vld [vmem:[#allocation2 + $0x470] sm:$0xff]
    %v214 = vld [vmem:[#allocation2 + $0x478] sm:$0xff]
    %v215 = vld [vmem:[#allocation2 + $0x480] sm:$0xff]
    %v216 = vld [vmem:[#allocation2 + $0x488] sm:$0xff]
    %v217 = vld [vmem:[#allocation2 + $0x490] sm:$0xff]
    %v218 = vld [vmem:[#allocation2 + $0x498] sm:$0xff]
    %v219 = vld [vmem:[#allocation2 + $0x4a0] sm:$0xff]
    %v220 = vld [vmem:[#allocation2 + $0x4a8] sm:$0xff]
    %v221 = vld [vmem:[#allocation2 + $0x4b0] sm:$0xff]
    %v222 = vld [vmem:[#allocation2 + $0x4b8] sm:$0xff]
    %v223 = vld [vmem:[#allocation2 + $0x4c0] sm:$0xff]
    %v224 = vld [vmem:[#allocation2 + $0x4c8] sm:$0xff]
    %v225 = vld [vmem:[#allocation2 + $0x4d0] sm:$0xff]
    %v226 = vld [vmem:[#allocation2 + $0x4d8] sm:$0xff]
    %v227 = vld [vmem:[#allocation2 + $0x4e0] sm:$0xff]
    %v228 = vld [vmem:[#allocation2 + $0x4e8] sm:$0xff]
    %v229 = vld [vmem:[#allocation2 + $0x4f0] sm:$0xff]
    %v230 = vld [vmem:[#allocation2 + $0x4f8] sm:$0xff]
    %v231 = vld [vmem:[#allocation2 + $0x500] sm:$0xff]
    %v232 = vld [vmem:[#allocation2 + $0x508] sm:$0xff]
    %v233 = vld [vmem:[#allocation2 + $0x510] sm:$0xff]
    %v234 = vld [vmem:[#allocation2 + $0x518] sm:$0xff]
    %v235 = vld [vmem:[#allocation2 + $0x520] sm:$0xff]
    %v236 = vld [vmem:[#allocation2 + $0x528] sm:$0xff]
    %v237 = vld [vmem:[#allocation2 + $0x530] sm:$0xff]
    %v238 = vld [vmem:[#allocation2 + $0x538] sm:$0xff]
    %v239 = vld [vmem:[#allocation2 + $0x540] sm:$0xff]
    %v240 = vld [vmem:[#allocation2 + $0x548] sm:$0xff]
    %v241 = vld [vmem:[#allocation2 + $0x550] sm:$0xff]
    %v242 = vld [vmem:[#allocation2 + $0x558] sm:$0xff]
    %v243 = vld [vmem:[#allocation2 + $0x560] sm:$0xff]
    %v244 = vld [vmem:[#allocation2 + $0x568] sm:$0xff]
    %v245 = vld [vmem:[#allocation2 + $0x570] sm:$0xff]
    %v246 = vld [vmem:[#allocation2 + $0x578] sm:$0xff]
    %v247 = vld [vmem:[#allocation2 + $0x580] sm:$0xff]
    %v248 = vld [vmem:[#allocation2 + $0x588] sm:$0xff]
    %v249 = vld [vmem:[#allocation2 + $0x590] sm:$0xff]
    %v250 = vld [vmem:[#allocation2 + $0x598] sm:$0xff]
    %v251 = vld [vmem:[#allocation2 + $0x5a0] sm:$0xff]
    %v252 = vld [vmem:[#allocation2 + $0x5a8] sm:$0xff]
    %v253 = vld [vmem:[#allocation2 + $0x5b0] sm:$0xff]
    %v254 = vld [vmem:[#allocation2 + $0x5b8] sm:$0xff]
    %v255 = vld [vmem:[#allocation2 + $0x5c0] sm:$0xff]
    %v256 = vld [vmem:[#allocation2 + $0x5c8] sm:$0xff]
    %v257 = vld [vmem:[#allocation2 + $0x5d0] sm:$0xff]
    %v258 = vld [vmem:[#allocation2 + $0x5d8] sm:$0xff]
    %v259 = vld [vmem:[#allocation2 + $0x5e0] sm:$0xff]
    %v260 = vld [vmem:[#allocation2 + $0x5e8] sm:$0xff]
    %v261 = vld [vmem:[#allocation2 + $0x5f0] sm:$0xff]
    %v262 = vld [vmem:[#allocation2 + $0x5f8] sm:$0xff]
    %v263 = vld [vmem:[#allocation2 + $0x600] sm:$0xff]
    %v264 = vld [vmem:[#allocation2 + $0x608] sm:$0xff]
    %v265 = vld [vmem:[#allocation2 + $0x610] sm:$0xff]
    %v266 = vld [vmem:[#allocation2 + $0x618] sm:$0xff]
    %v267 = vld [vmem:[#allocation2 + $0x620] sm:$0xff]
    %v268 = vld [vmem:[#allocation2 + $0x628] sm:$0xff]
    %v269 = vld [vmem:[#allocation2 + $0x630] sm:$0xff]
    %v270 = vld [vmem:[#allocation2 + $0x638] sm:$0xff]
    %v271 = vld [vmem:[#allocation2 + $0x640] sm:$0xff]
    %v272 = vld [vmem:[#allocation2 + $0x648] sm:$0xff]
    %v273 = vld [vmem:[#allocation2 + $0x650] sm:$0xff]
    %v274 = vld [vmem:[#allocation2 + $0x658] sm:$0xff]
    %v275 = vld [vmem:[#allocation2 + $0x660] sm:$0xff]
    %v276 = vld [vmem:[#allocation2 + $0x668] sm:$0xff]
    %v277 = vld [vmem:[#allocation2 + $0x670] sm:$0xff]
    %v278 = vld [vmem:[#allocation2 + $0x678] sm:$0xff]
    %v279 = vld [vmem:[#allocation2 + $0x680] sm:$0xff]
    %v280 = vld [vmem:[#allocation2 + $0x688] sm:$0xff]
    %v281 = vld [vmem:[#allocation2 + $0x690] sm:$0xff]
    %v282 = vld [vmem:[#allocation2 + $0x698] sm:$0xff]
    %v283 = vld [vmem:[#allocation2 + $0x6a0] sm:$0xff]
    %v284 = vld [vmem:[#allocation2 + $0x6a8] sm:$0xff]
    %v285 = vld [vmem:[#allocation2 + $0x6b0] sm:$0xff]
    %v286 = vld [vmem:[#allocation2 + $0x6b8] sm:$0xff]
    %v287 = vld [vmem:[#allocation2 + $0x6c0] sm:$0xff]
    %v288 = vld [vmem:[#allocation2 + $0x6c8] sm:$0xff]
    %v289 = vld [vmem:[#allocation2 + $0x6d0] sm:$0xff]
    %v290 = vld [vmem:[#allocation2 + $0x6d8] sm:$0xff]
    %v291 = vld [vmem:[#allocation2 + $0x6e0] sm:$0xff]
    %v292 = vld [vmem:[#allocation2 + $0x6e8] sm:$0xff]
    %v293 = vld [vmem:[#allocation2 + $0x6f0] sm:$0xff]
    %v294 = vld [vmem:[#allocation2 + $0x6f8] sm:$0xff]
    %v295 = vld [vmem:[#allocation2 + $0x700] sm:$0xff]
    %v296 = vld [vmem:[#allocation2 + $0x708] sm:$0xff]
    %v297 = vld [vmem:[#allocation2 + $0x710] sm:$0xff]
    %v298 = vld [vmem:[#allocation2 + $0x718] sm:$0xff]
    %v299 = vld [vmem:[#allocation2 + $0x720] sm:$0xff]
    %v300 = vld [vmem:[#allocation2 + $0x728] sm:$0xff]
    %v301 = vld [vmem:[#allocation2 + $0x730] sm:$0xff]
    %v302 = vld [vmem:[#allocation2 + $0x738] sm:$0xff]
    %v303 = vld [vmem:[#allocation2 + $0x740] sm:$0xff]
    %v304 = vld [vmem:[#allocation2 + $0x748] sm:$0xff]
    %v305 = vld [vmem:[#allocation2 + $0x750] sm:$0xff]
    %v306 = vld [vmem:[#allocation2 + $0x758] sm:$0xff]
    %v307 = vld [vmem:[#allocation2 + $0x760] sm:$0xff]
    %v308 = vld [vmem:[#allocation2 + $0x768] sm:$0xff]
    %v309 = vld [vmem:[#allocation2 + $0x770] sm:$0xff]
    %v310 = vld [vmem:[#allocation2 + $0x778] sm:$0xff]
    %v311 = vld [vmem:[#allocation2 + $0x780] sm:$0xff]
    %v312 = vld [vmem:[#allocation2 + $0x788] sm:$0xff]
    %v313 = vld [vmem:[#allocation2 + $0x790] sm:$0xff]
    %v314 = vld [vmem:[#allocation2 + $0x798] sm:$0xff]
    %v315 = vld [vmem:[#allocation2 + $0x7a0] sm:$0xff]
    %v316 = vld [vmem:[#allocation2 + $0x7a8] sm:$0xff]
    %v317 = vld [vmem:[#allocation2 + $0x7b0] sm:$0xff]
    %v318 = vld [vmem:[#allocation2 + $0x7b8] sm:$0xff]
    %v319 = vld [vmem:[#allocation2 + $0x7c0] sm:$0xff]
    %v320 = vld [vmem:[#allocation2 + $0x7c8] sm:$0xff]
    %v321 = vld [vmem:[#allocation2 + $0x7d0] sm:$0xff]
    %v322 = vld [vmem:[#allocation2 + $0x7d8] sm:$0xff]
    %v323 = vld [vmem:[#allocation2 + $0x7e0] sm:$0xff]
    %v324 = vld [vmem:[#allocation2 + $0x7e8] sm:$0xff]
    %v325 = vld [vmem:[#allocation2 + $0x7f0] sm:$0xff]
    %v326 = vld [vmem:[#allocation2 + $0x7f8] sm:$0xff]
    %v327 = vld [vmem:[#allocation2 + $0x800] sm:$0xff]
    %v328 = vld [vmem:[#allocation2 + $0x808] sm:$0xff]
    %v329 = vld [vmem:[#allocation2 + $0x810] sm:$0xff]
    %v330 = vld [vmem:[#allocation2 + $0x818] sm:$0xff]
    %v331 = vld [vmem:[#allocation2 + $0x820] sm:$0xff]
    %v332 = vld [vmem:[#allocation2 + $0x828] sm:$0xff]
    %v333 = vld [vmem:[#allocation2 + $0x830] sm:$0xff]
    %v334 = vld [vmem:[#allocation2 + $0x838] sm:$0xff]
    %v335 = vld [vmem:[#allocation2 + $0x840] sm:$0xff]
    %v336 = vld [vmem:[#allocation2 + $0x848] sm:$0xff]
    %v337 = vld [vmem:[#allocation2 + $0x850] sm:$0xff]
    %v338 = vld [vmem:[#allocation2 + $0x858] sm:$0xff]
    %v339 = vld [vmem:[#allocation2 + $0x860] sm:$0xff]
    %v340 = vld [vmem:[#allocation2 + $0x868] sm:$0xff]
    %v341 = vld [vmem:[#allocation2 + $0x870] sm:$0xff]
    %v342 = vld [vmem:[#allocation2 + $0x878] sm:$0xff]
    %v343 = vld [vmem:[#allocation2 + $0x880] sm:$0xff]
    %v344 = vld [vmem:[#allocation2 + $0x888] sm:$0xff]
    %v345 = vld [vmem:[#allocation2 + $0x890] sm:$0xff]
    %v346 = vld [vmem:[#allocation2 + $0x898] sm:$0xff]
    %v347 = vld [vmem:[#allocation2 + $0x8a0] sm:$0xff]
    %v348 = vld [vmem:[#allocation2 + $0x8a8] sm:$0xff]
    %v349 = vld [vmem:[#allocation2 + $0x8b0] sm:$0xff]
    %v350 = vld [vmem:[#allocation2 + $0x8b8] sm:$0xff]
    %v351 = vld [vmem:[#allocation2 + $0x8c0] sm:$0xff]
    %v352 = vld [vmem:[#allocation2 + $0x8c8] sm:$0xff]
    %v353 = vld [vmem:[#allocation2 + $0x8d0] sm:$0xff]
    %v354 = vld [vmem:[#allocation2 + $0x8d8] sm:$0xff]
    %v355 = vld [vmem:[#allocation2 + $0x8e0] sm:$0xff]
    %v356 = vld [vmem:[#allocation2 + $0x8e8] sm:$0xff]
    %v357 = vld [vmem:[#allocation2 + $0x8f0] sm:$0xff]
    %v358 = vld [vmem:[#allocation2 + $0x8f8] sm:$0xff]
    %v359 = vld [vmem:[#allocation2 + $0x900] sm:$0xff]
    %v360 = vld [vmem:[#allocation2 + $0x908] sm:$0xff]
    %v361 = vld [vmem:[#allocation2 + $0x910] sm:$0xff]
    %v362 = vld [vmem:[#allocation2 + $0x918] sm:$0xff]
    %v363 = vld [vmem:[#allocation2 + $0x920] sm:$0xff]
    %v364 = vld [vmem:[#allocation2 + $0x928] sm:$0xff]
    %v365 = vld [vmem:[#allocation2 + $0x930] sm:$0xff]
    %v366 = vld [vmem:[#allocation2 + $0x938] sm:$0xff]
    %v367 = vld [vmem:[#allocation2 + $0x940] sm:$0xff]
    %v368 = vld [vmem:[#allocation2 + $0x948] sm:$0xff]
    %v369 = vld [vmem:[#allocation2 + $0x950] sm:$0xff]
    %v370 = vld [vmem:[#allocation2 + $0x958] sm:$0xff]
    %v371 = vld [vmem:[#allocation2 + $0x960] sm:$0xff]
    %v372 = vld [vmem:[#allocation2 + $0x968] sm:$0xff]
    %v373 = vld [vmem:[#allocation2 + $0x970] sm:$0xff]
    %v374 = vld [vmem:[#allocation2 + $0x978] sm:$0xff]
    %v375 = vld [vmem:[#allocation2 + $0x980] sm:$0xff]
    %v376 = vld [vmem:[#allocation2 + $0x988] sm:$0xff]
    %v377 = vld [vmem:[#allocation2 + $0x990] sm:$0xff]
    %v378 = vld [vmem:[#allocation2 + $0x998] sm:$0xff]
    %v379 = vld [vmem:[#allocation2 + $0x9a0] sm:$0xff]
    %v380 = vld [vmem:[#allocation2 + $0x9a8] sm:$0xff]
    %v381 = vld [vmem:[#allocation2 + $0x9b0] sm:$0xff]
    %v382 = vld [vmem:[#allocation2 + $0x9b8] sm:$0xff]
    %v383 = vld [vmem:[#allocation2 + $0x9c0] sm:$0xff]
    %v384 = vld [vmem:[#allocation2 + $0x9c8] sm:$0xff]
    %v385 = vld [vmem:[#allocation2 + $0x9d0] sm:$0xff]
    %v386 = vld [vmem:[#allocation2 + $0x9d8] sm:$0xff]
    %v387 = vld [vmem:[#allocation2 + $0x9e0] sm:$0xff]
    %v388 = vld [vmem:[#allocation2 + $0x9e8] sm:$0xff]
    %v389 = vld [vmem:[#allocation2 + $0x9f0] sm:$0xff]
    %v390 = vld [vmem:[#allocation2 + $0x9f8] sm:$0xff]
    %v391 = vld [vmem:[#allocation2 + $0xa00] sm:$0xff]
    %v392 = vld [vmem:[#allocation2 + $0xa08] sm:$0xff]
    %v393 = vld [vmem:[#allocation2 + $0xa10] sm:$0xff]
    %v394 = vld [vmem:[#allocation2 + $0xa18] sm:$0xff]
    %v395 = vld [vmem:[#allocation2 + $0xa20] sm:$0xff]
    %v396 = vld [vmem:[#allocation2 + $0xa28] sm:$0xff]
    %v397 = vld [vmem:[#allocation2 + $0xa30] sm:$0xff]
    %v398 = vld [vmem:[#allocation2 + $0xa38] sm:$0xff]
    %v399 = vld [vmem:[#allocation2 + $0xa40] sm:$0xff]
    %v400 = vld [vmem:[#allocation2 + $0xa48] sm:$0xff]
    %v401 = vld [vmem:[#allocation2 + $0xa50] sm:$0xff]
    %v402 = vld [vmem:[#allocation2 + $0xa58] sm:$0xff]
    %v403 = vld [vmem:[#allocation2 + $0xa60] sm:$0xff]
    %v404 = vld [vmem:[#allocation2 + $0xa68] sm:$0xff]
    %v405 = vld [vmem:[#allocation2 + $0xa70] sm:$0xff]
    %v406 = vld [vmem:[#allocation2 + $0xa78] sm:$0xff]
    %v407 = vld [vmem:[#allocation2 + $0xa80] sm:$0xff]
    %v408 = vld [vmem:[#allocation2 + $0xa88] sm:$0xff]
    %v409 = vld [vmem:[#allocation2 + $0xa90] sm:$0xff]
    %v410 = vld [vmem:[#allocation2 + $0xa98] sm:$0xff]
    %v411 = vld [vmem:[#allocation2 + $0xaa0] sm:$0xff]
    %v412 = vld [vmem:[#allocation2 + $0xaa8] sm:$0xff]
    %v413 = vld [vmem:[#allocation2 + $0xab0] sm:$0xff]
    %v414 = vld [vmem:[#allocation2 + $0xab8] sm:$0xff]
    %v415 = vld [vmem:[#allocation2 + $0xac0] sm:$0xff]
    %v416 = vld [vmem:[#allocation2 + $0xac8] sm:$0xff]
    %v417 = vld [vmem:[#allocation2 + $0xad0] sm:$0xff]
    %v418 = vld [vmem:[#allocation2 + $0xad8] sm:$0xff]
    %v419 = vld [vmem:[#allocation2 + $0xae0] sm:$0xff]
    %v420 = vld [vmem:[#allocation2 + $0xae8] sm:$0xff]
    %v421 = vld [vmem:[#allocation2 + $0xaf0] sm:$0xff]
    %v422 = vld [vmem:[#allocation2 + $0xaf8] sm:$0xff]
    %v423 = vld [vmem:[#allocation2 + $0xb00] sm:$0xff]
    %v424 = vld [vmem:[#allocation2 + $0xb08] sm:$0xff]
    %v425 = vld [vmem:[#allocation2 + $0xb10] sm:$0xff]
    %v426 = vld [vmem:[#allocation2 + $0xb18] sm:$0xff]
    %v427 = vld [vmem:[#allocation2 + $0xb20] sm:$0xff]
    %v428 = vld [vmem:[#allocation2 + $0xb28] sm:$0xff]
    %v429 = vld [vmem:[#allocation2 + $0xb30] sm:$0xff]
    %v430 = vld [vmem:[#allocation2 + $0xb38] sm:$0xff]
    %v431 = vld [vmem:[#allocation2 + $0xb40] sm:$0xff]
    %v432 = vld [vmem:[#allocation2 + $0xb48] sm:$0xff]
    %v433 = vld [vmem:[#allocation2 + $0xb50] sm:$0xff]
    %v434 = vld [vmem:[#allocation2 + $0xb58] sm:$0xff]
    %v435 = vld [vmem:[#allocation2 + $0xb60] sm:$0xff]
    %v436 = vld [vmem:[#allocation2 + $0xb68] sm:$0xff]
    %v437 = vld [vmem:[#allocation2 + $0xb70] sm:$0xff]
    %v438 = vld [vmem:[#allocation2 + $0xb78] sm:$0xff]
    %v439 = vld [vmem:[#allocation2 + $0xb80] sm:$0xff]
    %v440 = vld [vmem:[#allocation2 + $0xb88] sm:$0xff]
    %v441 = vld [vmem:[#allocation2 + $0xb90] sm:$0xff]
    %v442 = vld [vmem:[#allocation2 + $0xb98] sm:$0xff]
    %v443 = vld [vmem:[#allocation2 + $0xba0] sm:$0xff]
    %v444 = vld [vmem:[#allocation2 + $0xba8] sm:$0xff]
    %v445 = vld [vmem:[#allocation2 + $0xbb0] sm:$0xff]
    %v446 = vld [vmem:[#allocation2 + $0xbb8] sm:$0xff]
    %v447 = vld [vmem:[#allocation2 + $0xbc0] sm:$0xff]
    %v448 = vld [vmem:[#allocation2 + $0xbc8] sm:$0xff]
    %v449 = vld [vmem:[#allocation2 + $0xbd0] sm:$0xff]
    %v450 = vld [vmem:[#allocation2 + $0xbd8] sm:$0xff]
    %v451 = vld [vmem:[#allocation2 + $0xbe0] sm:$0xff]
    %v452 = vld [vmem:[#allocation2 + $0xbe8] sm:$0xff]
    %v453 = vld [vmem:[#allocation2 + $0xbf0] sm:$0xff]
    %v454 = vld [vmem:[#allocation2 + $0xbf8] sm:$0xff]
    %v455 = vpack.c.bf16 %v77, %v71
    %v456 = vpack.c.bf16 %v78, %v72
    %v457 = vpack.c.bf16 %v79, %v73
    %v458 = vpack.c.bf16 %v80, %v74
    %v459 = vpack.c.bf16 %v81, %v75
    %v460 = vpack.c.bf16 %v82, %v76
    %v461 = vpack.c.bf16 %v89, %v83
    %v462 = vpack.c.bf16 %v90, %v84
    %v463 = vpack.c.bf16 %v91, %v85
    %v464 = vpack.c.bf16 %v92, %v86
    %v465 = vpack.c.bf16 %v93, %v87
    %v466 = vpack.c.bf16 %v94, %v88
    %v467 = vpack.c.bf16 %v101, %v95
    %v468 = vpack.c.bf16 %v102, %v96
    %v469 = vpack.c.bf16 %v103, %v97
    %v470 = vpack.c.bf16 %v104, %v98
    %v471 = vpack.c.bf16 %v105, %v99
    %v472 = vpack.c.bf16 %v106, %v100
    %v473 = vpack.c.bf16 %v113, %v107
    %v474 = vpack.c.bf16 %v114, %v108
    %v475 = vpack.c.bf16 %v115, %v109
    %v476 = vpack.c.bf16 %v116, %v110
    %v477 = vpack.c.bf16 %v117, %v111
    %v478 = vpack.c.bf16 %v118, %v112
    %v479 = vpack.c.bf16 %v125, %v119
    %v480 = vpack.c.bf16 %v126, %v120
    %v481 = vpack.c.bf16 %v127, %v121
    %v482 = vpack.c.bf16 %v128, %v122
    %v483 = vpack.c.bf16 %v129, %v123
    %v484 = vpack.c.bf16 %v130, %v124
    %v485 = vpack.c.bf16 %v137, %v131
    %v486 = vpack.c.bf16 %v138, %v132
    %v487 = vpack.c.bf16 %v139, %v133
    %v488 = vpack.c.bf16 %v140, %v134
    %v489 = vpack.c.bf16 %v141, %v135
    %v490 = vpack.c.bf16 %v142, %v136
    %v491 = vpack.c.bf16 %v149, %v143
    %v492 = vpack.c.bf16 %v150, %v144
    %v493 = vpack.c.bf16 %v151, %v145
    %v494 = vpack.c.bf16 %v152, %v146
    %v495 = vpack.c.bf16 %v153, %v147
    %v496 = vpack.c.bf16 %v154, %v148
    %v497 = vpack.c.bf16 %v161, %v155
    %v498 = vpack.c.bf16 %v162, %v156
    %v499 = vpack.c.bf16 %v163, %v157
    %v500 = vpack.c.bf16 %v164, %v158
    %v501 = vpack.c.bf16 %v165, %v159
    %v502 = vpack.c.bf16 %v166, %v160
    %v503 = vpack.c.bf16 %v173, %v167
    %v504 = vpack.c.bf16 %v174, %v168
    %v505 = vpack.c.bf16 %v175, %v169
    %v506 = vpack.c.bf16 %v176, %v170
    %v507 = vpack.c.bf16 %v177, %v171
    %v508 = vpack.c.bf16 %v178, %v172
    %v509 = vpack.c.bf16 %v185, %v179
    %v510 = vpack.c.bf16 %v186, %v180
    %v511 = vpack.c.bf16 %v187, %v181
    %v512 = vpack.c.bf16 %v188, %v182
    %v513 = vpack.c.bf16 %v189, %v183
    %v514 = vpack.c.bf16 %v190, %v184
    %v515 = vpack.c.bf16 %v197, %v191
    %v516 = vpack.c.bf16 %v198, %v192
    %v517 = vpack.c.bf16 %v199, %v193
    %v518 = vpack.c.bf16 %v200, %v194
    %v519 = vpack.c.bf16 %v201, %v195
    %v520 = vpack.c.bf16 %v202, %v196
    %v521 = vpack.c.bf16 %v209, %v203
    %v522 = vpack.c.bf16 %v210, %v204
    %v523 = vpack.c.bf16 %v211, %v205
    %v524 = vpack.c.bf16 %v212, %v206
    %v525 = vpack.c.bf16 %v213, %v207
    %v526 = vpack.c.bf16 %v214, %v208
    %v527 = vpack.c.bf16 %v221, %v215
    %v528 = vpack.c.bf16 %v222, %v216
    %v529 = vpack.c.bf16 %v223, %v217
    %v530 = vpack.c.bf16 %v224, %v218
    %v531 = vpack.c.bf16 %v225, %v219
    %v532 = vpack.c.bf16 %v226, %v220
    %v533 = vpack.c.bf16 %v233, %v227
    %v534 = vpack.c.bf16 %v234, %v228
    %v535 = vpack.c.bf16 %v235, %v229
    %v536 = vpack.c.bf16 %v236, %v230
    %v537 = vpack.c.bf16 %v237, %v231
    %v538 = vpack.c.bf16 %v238, %v232
    %v539 = vpack.c.bf16 %v245, %v239
    %v540 = vpack.c.bf16 %v246, %v240
    %v541 = vpack.c.bf16 %v247, %v241
    %v542 = vpack.c.bf16 %v248, %v242
    %v543 = vpack.c.bf16 %v249, %v243
    %v544 = vpack.c.bf16 %v250, %v244
    %v545 = vpack.c.bf16 %v257, %v251
    %v546 = vpack.c.bf16 %v258, %v252
    %v547 = vpack.c.bf16 %v259, %v253
    %v548 = vpack.c.bf16 %v260, %v254
    %v549 = vpack.c.bf16 %v261, %v255
    %v550 = vpack.c.bf16 %v262, %v256
    %v551 = vpack.c.bf16 %v269, %v263
    %v552 = vpack.c.bf16 %v270, %v264
    %v553 = vpack.c.bf16 %v271, %v265
    %v554 = vpack.c.bf16 %v272, %v266
    %v555 = vpack.c.bf16 %v273, %v267
    %v556 = vpack.c.bf16 %v274, %v268
    %v557 = vpack.c.bf16 %v281, %v275
    %v558 = vpack.c.bf16 %v282, %v276
    %v559 = vpack.c.bf16 %v283, %v277
    %v560 = vpack.c.bf16 %v284, %v278
    %v561 = vpack.c.bf16 %v285, %v279
    %v562 = vpack.c.bf16 %v286, %v280
    %v563 = vpack.c.bf16 %v293, %v287
    %v564 = vpack.c.bf16 %v294, %v288
    %v565 = vpack.c.bf16 %v295, %v289
    %v566 = vpack.c.bf16 %v296, %v290
    %v567 = vpack.c.bf16 %v297, %v291
    %v568 = vpack.c.bf16 %v298, %v292
    %v569 = vpack.c.bf16 %v305, %v299
    %v570 = vpack.c.bf16 %v306, %v300
    %v571 = vpack.c.bf16 %v307, %v301
    %v572 = vpack.c.bf16 %v308, %v302
    %v573 = vpack.c.bf16 %v309, %v303
    %v574 = vpack.c.bf16 %v310, %v304
    %v575 = vpack.c.bf16 %v317, %v311
    %v576 = vpack.c.bf16 %v318, %v312
    %v577 = vpack.c.bf16 %v319, %v313
    %v578 = vpack.c.bf16 %v320, %v314
    %v579 = vpack.c.bf16 %v321, %v315
    %v580 = vpack.c.bf16 %v322, %v316
    %v581 = vpack.c.bf16 %v329, %v323
    %v582 = vpack.c.bf16 %v330, %v324
    %v583 = vpack.c.bf16 %v331, %v325
    %v584 = vpack.c.bf16 %v332, %v326
    %v585 = vpack.c.bf16 %v333, %v327
    %v586 = vpack.c.bf16 %v334, %v328
    %v587 = vpack.c.bf16 %v341, %v335
    %v588 = vpack.c.bf16 %v342, %v336
    %v589 = vpack.c.bf16 %v343, %v337
    %v590 = vpack.c.bf16 %v344, %v338
    %v591 = vpack.c.bf16 %v345, %v339
    %v592 = vpack.c.bf16 %v346, %v340
    %v593 = vpack.c.bf16 %v353, %v347
    %v594 = vpack.c.bf16 %v354, %v348
    %v595 = vpack.c.bf16 %v355, %v349
    %v596 = vpack.c.bf16 %v356, %v350
    %v597 = vpack.c.bf16 %v357, %v351
    %v598 = vpack.c.bf16 %v358, %v352
    %v599 = vpack.c.bf16 %v365, %v359
    %v600 = vpack.c.bf16 %v366, %v360
    %v601 = vpack.c.bf16 %v367, %v361
    %v602 = vpack.c.bf16 %v368, %v362
    %v603 = vpack.c.bf16 %v369, %v363
    %v604 = vpack.c.bf16 %v370, %v364
    %v605 = vpack.c.bf16 %v377, %v371
    %v606 = vpack.c.bf16 %v378, %v372
    %v607 = vpack.c.bf16 %v379, %v373
    %v608 = vpack.c.bf16 %v380, %v374
    %v609 = vpack.c.bf16 %v381, %v375
    %v610 = vpack.c.bf16 %v382, %v376
    %v611 = vpack.c.bf16 %v389, %v383
    %v612 = vpack.c.bf16 %v390, %v384
    %v613 = vpack.c.bf16 %v391, %v385
    %v614 = vpack.c.bf16 %v392, %v386
    %v615 = vpack.c.bf16 %v393, %v387
    %v616 = vpack.c.bf16 %v394, %v388
    %v617 = vpack.c.bf16 %v401, %v395
    %v618 = vpack.c.bf16 %v402, %v396
    %v619 = vpack.c.bf16 %v403, %v397
    %v620 = vpack.c.bf16 %v404, %v398
    %v621 = vpack.c.bf16 %v405, %v399
    %v622 = vpack.c.bf16 %v406, %v400
    %v623 = vpack.c.bf16 %v413, %v407
    %v624 = vpack.c.bf16 %v414, %v408
    %v625 = vpack.c.bf16 %v415, %v409
    %v626 = vpack.c.bf16 %v416, %v410
    %v627 = vpack.c.bf16 %v417, %v411
    %v628 = vpack.c.bf16 %v418, %v412
    %v629 = vpack.c.bf16 %v425, %v419
    %v630 = vpack.c.bf16 %v426, %v420
    %v631 = vpack.c.bf16 %v427, %v421
    %v632 = vpack.c.bf16 %v428, %v422
    %v633 = vpack.c.bf16 %v429, %v423
    %v634 = vpack.c.bf16 %v430, %v424
    %v635 = vpack.c.bf16 %v437, %v431
    %v636 = vpack.c.bf16 %v438, %v432
    %v637 = vpack.c.bf16 %v439, %v433
    %v638 = vpack.c.bf16 %v440, %v434
    %v639 = vpack.c.bf16 %v441, %v435
    %v640 = vpack.c.bf16 %v442, %v436
    %v641 = vpack.c.bf16 %v449, %v443
    %v642 = vpack.c.bf16 %v450, %v444
    %v643 = vpack.c.bf16 %v451, %v445
    %v644 = vpack.c.bf16 %v452, %v446
    %v645 = vpack.c.bf16 %v453, %v447
    %v646 = vpack.c.bf16 %v454, %v448
    %v647 = vld [vmem:[#allocation6] sm:$0xf]
    %v648 = vld [vmem:[%s2] sm:$0xff]
    %v649 = vld [vmem:[%s2 + $0x8] sm:$0xff]
    %v650 = vld [vmem:[%s2 + $0x10] sm:$0xff]
    %v651 = vld [vmem:[%s2 + $0x18] sm:$0xff]
    %v652 = vld [vmem:[%s2 + $0x20] sm:$0xff]
    %v653 = vld [vmem:[%s2 + $0x28] sm:$0xff]
    %v660 = vunpack.c.l.b16 %v648
    %v661 = vunpack.c.h.b16 %v648
    %v662 = vunpack.c.l.b16 %v649
    %v663 = vunpack.c.h.b16 %v649
    %v664 = vunpack.c.l.b16 %v650
    %v665 = vunpack.c.h.b16 %v650
    %v666 = vunpack.c.l.b16 %v651
    %v667 = vunpack.c.h.b16 %v651
    %v668 = vunpack.c.l.b16 %v652
    %v669 = vunpack.c.h.b16 %v652
    %v670 = vunpack.c.l.b16 %v653
    %v671 = vunpack.c.h.b16 %v653
    %v672 = vpack.c.b16 %v666, %v660
    %v673 = vpack.c.b16 %v667, %v661
    %v674 = vpack.c.b16 %v668, %v662
    %v675 = vpack.c.b16 %v669, %v663
    %v676 = vpack.c.b16 %v670, %v664
    %v677 = vpack.c.b16 %v671, %v665
    %684 = vmatprep.subr.bf16.mxu0 %v456
    %685 = vmatpush1.bf16.xpose.msra.mxu0 %v455
    %686 = vmatprep.subr.bf16.mxu0 %v462
    %687 = vmatpush1.bf16.xpose.msra.mxu0 %v461
    %688 = vmatprep.subr.bf16.mxu0 %v468
    %689 = vmatpush1.bf16.xpose.msra.mxu0 %v467
    %690 = vmatprep.subr.bf16.mxu0 %v474
    %691 = vmatpush1.bf16.xpose.msra.mxu0 %v473
    %692 = vmatprep.subr.bf16.mxu0 %v480
    %693 = vmatpush1.bf16.xpose.msra.mxu0 %v479
    %694 = vmatprep.subr.bf16.mxu0 %v486
    %695 = vmatpush1.bf16.xpose.msra.mxu0 %v485
    %696 = vmatprep.subr.bf16.mxu0 %v492
    %697 = vmatpush1.bf16.xpose.msra.mxu0 %v491
    %698 = vmatprep.subr.bf16.mxu0 %v498
    %699 = vmatpush1.bf16.xpose.msra.mxu0 %v497
    %700 = vmatprep.subr.bf16.mxu0 %v504
    %701 = vmatpush1.bf16.xpose.msra.mxu0 %v503
    %702 = vmatprep.subr.bf16.mxu0 %v510
    %703 = vmatpush1.bf16.xpose.msra.mxu0 %v509
    %704 = vmatprep.subr.bf16.mxu0 %v516
    %705 = vmatpush1.bf16.xpose.msra.mxu0 %v515
    %706 = vmatprep.subr.bf16.mxu0 %v522
    %707 = vmatpush1.bf16.xpose.msra.mxu0 %v521
    %708 = vmatprep.subr.bf16.mxu0 %v528
    %709 = vmatpush1.bf16.xpose.msra.mxu0 %v527
    %710 = vmatprep.subr.bf16.mxu0 %v534
    %711 = vmatpush1.bf16.xpose.msra.mxu0 %v533
    %712 = vmatprep.subr.bf16.mxu0 %v540
    %713 = vmatpush1.bf16.xpose.msra.mxu0 %v539
    %714 = vmatprep.subr.bf16.mxu0 %v546
    %715 = vmatpush1.bf16.xpose.msra.mxu0 %v545
    %716 = vmatprep.mubr.bf16.mxu0 %v673
    %717 = vmatmul.mubr.bf16.gmra.mrb[0].mxu0 %v672
    %v718 = vpop.f32.mrb[0].mxu0
    %v719 = vadd.f32 0.0, %v718
    %v720 = vpop.f32.mrb[0].mxu0
    %v721 = vadd.f32 0.0, %v720
    %v722 = vpop.f32.mrb[0].mxu0
    %v723 = vpop.f32.mrb[0].mxu0
    %724 = vdwg.mxu0
    %725 = vmatprep.subr.bf16.mxu0 %v458
    %726 = vmatpush1.bf16.xpose.msra.mxu0 %v457
    %727 = vmatprep.subr.bf16.mxu0 %v464
    %728 = vmatpush1.bf16.xpose.msra.mxu0 %v463
    %729 = vmatprep.subr.bf16.mxu0 %v470
    %730 = vmatpush1.bf16.xpose.msra.mxu0 %v469
    %731 = vmatprep.subr.bf16.mxu0 %v476
    %732 = vmatpush1.bf16.xpose.msra.mxu0 %v475
    %733 = vmatprep.subr.bf16.mxu0 %v482
    %734 = vmatpush1.bf16.xpose.msra.mxu0 %v481
    %735 = vmatprep.subr.bf16.mxu0 %v488
    %736 = vmatpush1.bf16.xpose.msra.mxu0 %v487
    %737 = vmatprep.subr.bf16.mxu0 %v494
    %738 = vmatpush1.bf16.xpose.msra.mxu0 %v493
    %739 = vmatprep.subr.bf16.mxu0 %v500
    %740 = vmatpush1.bf16.xpose.msra.mxu0 %v499
    %741 = vmatprep.subr.bf16.mxu0 %v506
    %742 = vmatpush1.bf16.xpose.msra.mxu0 %v505
    %743 = vmatprep.subr.bf16.mxu0 %v512
    %744 = vmatpush1.bf16.xpose.msra.mxu0 %v511
    %745 = vmatprep.subr.bf16.mxu0 %v518
    %746 = vmatpush1.bf16.xpose.msra.mxu0 %v517
    %747 = vmatprep.subr.bf16.mxu0 %v524
    %748 = vmatpush1.bf16.xpose.msra.mxu0 %v523
    %749 = vmatprep.subr.bf16.mxu0 %v530
    %750 = vmatpush1.bf16.xpose.msra.mxu0 %v529
    %751 = vmatprep.subr.bf16.mxu0 %v536
    %752 = vmatpush1.bf16.xpose.msra.mxu0 %v535
    %753 = vmatprep.subr.bf16.mxu0 %v542
    %754 = vmatpush1.bf16.xpose.msra.mxu0 %v541
    %755 = vmatprep.subr.bf16.mxu0 %v548
    %756 = vmatpush1.bf16.xpose.msra.mxu0 %v547
    %757 = vmatprep.mubr.bf16.mxu0 %v675
    %758 = vmatmul.mubr.bf16.gmra.mrb[0].mxu0 %v674
    %v759 = vpop.f32.mrb[0].mxu0
    %v760 = vadd.f32 %v719, %v759
    %v761 = vpop.f32.mrb[0].mxu0
    %v762 = vadd.f32 %v721, %v761
    %v763 = vpop.f32.mrb[0].mxu0
    %v764 = vpop.f32.mrb[0].mxu0
    %765 = vdwg.mxu0
    %766 = vmatprep.subr.bf16.mxu0 %v460
    %767 = vmatpush1.bf16.xpose.msra.mxu0 %v459
    %768 = vmatprep.subr.bf16.mxu0 %v466
    %769 = vmatpush1.bf16.xpose.msra.mxu0 %v465
    %770 = vmatprep.subr.bf16.mxu0 %v472
    %771 = vmatpush1.bf16.xpose.msra.mxu0 %v471
    %772 = vmatprep.subr.bf16.mxu0 %v478
    %773 = vmatpush1.bf16.xpose.msra.mxu0 %v477
    %774 = vmatprep.subr.bf16.mxu0 %v484
    %775 = vmatpush1.bf16.xpose.msra.mxu0 %v483
    %776 = vmatprep.subr.bf16.mxu0 %v490
    %777 = vmatpush1.bf16.xpose.msra.mxu0 %v489
    %778 = vmatprep.subr.bf16.mxu0 %v496
    %779 = vmatpush1.bf16.xpose.msra.mxu0 %v495
    %780 = vmatprep.subr.bf16.mxu0 %v502
    %781 = vmatpush1.bf16.xpose.msra.mxu0 %v501
    %782 = vmatprep.subr.bf16.mxu0 %v508
    %783 = vmatpush1.bf16.xpose.msra.mxu0 %v507
    %784 = vmatprep.subr.bf16.mxu0 %v514
    %785 = vmatpush1.bf16.xpose.msra.mxu0 %v513
    %786 = vmatprep.subr.bf16.mxu0 %v520
    %787 = vmatpush1.bf16.xpose.msra.mxu0 %v519
    %788 = vmatprep.subr.bf16.mxu0 %v526
    %789 = vmatpush1.bf16.xpose.msra.mxu0 %v525
    %790 = vmatprep.subr.bf16.mxu0 %v532
    %791 = vmatpush1.bf16.xpose.msra.mxu0 %v531
    %792 = vmatprep.subr.bf16.mxu0 %v538
    %793 = vmatpush1.bf16.xpose.msra.mxu0 %v537
    %794 = vmatprep.subr.bf16.mxu0 %v544
    %795 = vmatpush1.bf16.xpose.msra.mxu0 %v543
    %796 = vmatprep.subr.bf16.mxu0 %v550
    %797 = vmatpush1.bf16.xpose.msra.mxu0 %v549
    %798 = vmatprep.mubr.bf16.mxu0 %v677
    %799 = vmatmul.mubr.bf16.gmra.mrb[0].mxu0 %v676
    %v800 = vpop.f32.mrb[0].mxu0
    %v801 = vadd.f32 %v760, %v800
    %v802 = vpop.f32.mrb[0].mxu0
    %v803 = vadd.f32 %v762, %v802
    %v804 = vpop.f32.mrb[0].mxu0
    %v805 = vpop.f32.mrb[0].mxu0
    %806 = vdwg.mxu0
    %807 = vmatprep.subr.bf16.mxu0 %v552
    %808 = vmatpush1.bf16.xpose.msra.mxu0 %v551
    %809 = vmatprep.subr.bf16.mxu0 %v558
    %810 = vmatpush1.bf16.xpose.msra.mxu0 %v557
    %811 = vmatprep.subr.bf16.mxu0 %v564
    %812 = vmatpush1.bf16.xpose.msra.mxu0 %v563
    %813 = vmatprep.subr.bf16.mxu0 %v570
    %814 = vmatpush1.bf16.xpose.msra.mxu0 %v569
    %815 = vmatprep.subr.bf16.mxu0 %v576
    %816 = vmatpush1.bf16.xpose.msra.mxu0 %v575
    %817 = vmatprep.subr.bf16.mxu0 %v582
    %818 = vmatpush1.bf16.xpose.msra.mxu0 %v581
    %819 = vmatprep.subr.bf16.mxu0 %v588
    %820 = vmatpush1.bf16.xpose.msra.mxu0 %v587
    %821 = vmatprep.subr.bf16.mxu0 %v594
    %822 = vmatpush1.bf16.xpose.msra.mxu0 %v593
    %823 = vmatprep.subr.bf16.mxu0 %v600
    %824 = vmatpush1.bf16.xpose.msra.mxu0 %v599
    %825 = vmatprep.subr.bf16.mxu0 %v606
    %826 = vmatpush1.bf16.xpose.msra.mxu0 %v605
    %827 = vmatprep.subr.bf16.mxu0 %v612
    %828 = vmatpush1.bf16.xpose.msra.mxu0 %v611
    %829 = vmatprep.subr.bf16.mxu0 %v618
    %830 = vmatpush1.bf16.xpose.msra.mxu0 %v617
    %831 = vmatprep.subr.bf16.mxu0 %v624
    %832 = vmatpush1.bf16.xpose.msra.mxu0 %v623
    %833 = vmatprep.subr.bf16.mxu0 %v630
    %834 = vmatpush1.bf16.xpose.msra.mxu0 %v629
    %835 = vmatprep.subr.bf16.mxu0 %v636
    %836 = vmatpush1.bf16.xpose.msra.mxu0 %v635
    %837 = vmatprep.subr.bf16.mxu0 %v642
    %838 = vmatpush1.bf16.xpose.msra.mxu0 %v641
    %839 = vmatprep.mubr.bf16.mxu0 %v673
    %840 = vmatmul.mubr.bf16.gmra.mrb[0].mxu0 %v672
    %v841 = vpop.f32.mrb[0].mxu0
    %v842 = vadd.f32 0.0, %v841
    %v843 = vpop.f32.mrb[0].mxu0
    %v844 = vadd.f32 0.0, %v843
    %v845 = vpop.f32.mrb[0].mxu0
    %v846 = vpop.f32.mrb[0].mxu0
    %847 = vdwg.mxu0
    %848 = vmatprep.subr.bf16.mxu0 %v554
    %849 = vmatpush1.bf16.xpose.msra.mxu0 %v553
    %850 = vmatprep.subr.bf16.mxu0 %v560
    %851 = vmatpush1.bf16.xpose.msra.mxu0 %v559
    %852 = vmatprep.subr.bf16.mxu0 %v566
    %853 = vmatpush1.bf16.xpose.msra.mxu0 %v565
    %854 = vmatprep.subr.bf16.mxu0 %v572
    %855 = vmatpush1.bf16.xpose.msra.mxu0 %v571
    %856 = vmatprep.subr.bf16.mxu0 %v578
    %857 = vmatpush1.bf16.xpose.msra.mxu0 %v577
    %858 = vmatprep.subr.bf16.mxu0 %v584
    %859 = vmatpush1.bf16.xpose.msra.mxu0 %v583
    %860 = vmatprep.subr.bf16.mxu0 %v590
    %861 = vmatpush1.bf16.xpose.msra.mxu0 %v589
    %862 = vmatprep.subr.bf16.mxu0 %v596
    %863 = vmatpush1.bf16.xpose.msra.mxu0 %v595
    %864 = vmatprep.subr.bf16.mxu0 %v602
    %865 = vmatpush1.bf16.xpose.msra.mxu0 %v601
    %866 = vmatprep.subr.bf16.mxu0 %v608
    %867 = vmatpush1.bf16.xpose.msra.mxu0 %v607
    %868 = vmatprep.subr.bf16.mxu0 %v614
    %869 = vmatpush1.bf16.xpose.msra.mxu0 %v613
    %870 = vmatprep.subr.bf16.mxu0 %v620
    %871 = vmatpush1.bf16.xpose.msra.mxu0 %v619
    %872 = vmatprep.subr.bf16.mxu0 %v626
    %873 = vmatpush1.bf16.xpose.msra.mxu0 %v625
    %874 = vmatprep.subr.bf16.mxu0 %v632
    %875 = vmatpush1.bf16.xpose.msra.mxu0 %v631
    %876 = vmatprep.subr.bf16.mxu0 %v638
    %877 = vmatpush1.bf16.xpose.msra.mxu0 %v637
    %878 = vmatprep.subr.bf16.mxu0 %v644
    %879 = vmatpush1.bf16.xpose.msra.mxu0 %v643
    %880 = vmatprep.mubr.bf16.mxu0 %v675
    %881 = vmatmul.mubr.bf16.gmra.mrb[0].mxu0 %v674
    %v882 = vpop.f32.mrb[0].mxu0
    %v883 = vadd.f32 %v842, %v882
    %v884 = vpop.f32.mrb[0].mxu0
    %v885 = vadd.f32 %v844, %v884
    %v886 = vpop.f32.mrb[0].mxu0
    %v887 = vpop.f32.mrb[0].mxu0
    %888 = vdwg.mxu0
    %889 = vmatprep.subr.bf16.mxu0 %v556
    %890 = vmatpush1.bf16.xpose.msra.mxu0 %v555
    %891 = vmatprep.subr.bf16.mxu0 %v562
    %892 = vmatpush1.bf16.xpose.msra.mxu0 %v561
    %893 = vmatprep.subr.bf16.mxu0 %v568
    %894 = vmatpush1.bf16.xpose.msra.mxu0 %v567
    %895 = vmatprep.subr.bf16.mxu0 %v574
    %896 = vmatpush1.bf16.xpose.msra.mxu0 %v573
    %897 = vmatprep.subr.bf16.mxu0 %v580
    %898 = vmatpush1.bf16.xpose.msra.mxu0 %v579
    %899 = vmatprep.subr.bf16.mxu0 %v586
    %900 = vmatpush1.bf16.xpose.msra.mxu0 %v585
    %901 = vmatprep.subr.bf16.mxu0 %v592
    %902 = vmatpush1.bf16.xpose.msra.mxu0 %v591
    %903 = vmatprep.subr.bf16.mxu0 %v598
    %904 = vmatpush1.bf16.xpose.msra.mxu0 %v597
    %905 = vmatprep.subr.bf16.mxu0 %v604
    %906 = vmatpush1.bf16.xpose.msra.mxu0 %v603
    %907 = vmatprep.subr.bf16.mxu0 %v610
    %908 = vmatpush1.bf16.xpose.msra.mxu0 %v609
    %909 = vmatprep.subr.bf16.mxu0 %v616
    %910 = vmatpush1.bf16.xpose.msra.mxu0 %v615
    %911 = vmatprep.subr.bf16.mxu0 %v622
    %912 = vmatpush1.bf16.xpose.msra.mxu0 %v621
    %913 = vmatprep.subr.bf16.mxu0 %v628
    %914 = vmatpush1.bf16.xpose.msra.mxu0 %v627
    %915 = vmatprep.subr.bf16.mxu0 %v634
    %916 = vmatpush1.bf16.xpose.msra.mxu0 %v633
    %917 = vmatprep.subr.bf16.mxu0 %v640
    %918 = vmatpush1.bf16.xpose.msra.mxu0 %v639
    %919 = vmatprep.subr.bf16.mxu0 %v646
    %920 = vmatpush1.bf16.xpose.msra.mxu0 %v645
    %921 = vmatprep.mubr.bf16.mxu0 %v677
    %922 = vmatmul.mubr.bf16.gmra.mrb[0].mxu0 %v676
    %v923 = vpop.f32.mrb[0].mxu0
    %v924 = vadd.f32 %v883, %v923
    %v925 = vpop.f32.mrb[0].mxu0
    %v926 = vadd.f32 %v885, %v925
    %v927 = vpop.f32.mrb[0].mxu0
    %v928 = vpop.f32.mrb[0].mxu0
    %929 = vdwg.mxu0
    %v930 = vmax.f32 %v801, 0.0
    %v931 = vmax.f32 %v803, 0.0
    %v932 = vmax.f32 %v924, 0.0
    %v933 = vmax.f32 %v926, 0.0
    %s934 = sld [smem:[#allocation9]]
    %s935 = sld [smem:[#allocation9 + $0x1]]
    %s936 = sld [smem:[#allocation9 + $0x2]]
    %v937 = vstv %s934
    %v938 = vmul.f32 %v647, %v937
    %v939 = vstv %s935
    %v940 = vadd.f32 %v938, %v939
    %v941 = vmax.f32 %v940, 0.0
    %v942 = vld [vmem:[#allocation8] sm:$0xff]
    %v943 = vld [vmem:[#allocation8 + $0x8] sm:$0xff]
    %v944 = vld [vmem:[#allocation8 + $0x10] sm:$0xff]
    %v945 = vld [vmem:[#allocation8 + $0x18] sm:$0xff]
    %v946 = vld [vmem:[#allocation8 + $0x20] sm:$0xff]
    %v947 = vld [vmem:[#allocation8 + $0x28] sm:$0xff]
    %v948 = vld [vmem:[#allocation8 + $0x30] sm:$0xff]
    %v949 = vld [vmem:[#allocation8 + $0x38] sm:$0xff]
    %v950 = vld [vmem:[#allocation8 + $0x40] sm:$0xff]
    %v951 = vld [vmem:[#allocation8 + $0x48] sm:$0xff]
    %v952 = vld [vmem:[#allocation8 + $0x50] sm:$0xff]
    %v953 = vld [vmem:[#allocation8 + $0x58] sm:$0xff]
    %v954 = vld [vmem:[#allocation8 + $0x60] sm:$0xff]
    %v955 = vld [vmem:[#allocation8 + $0x68] sm:$0xff]
    %v956 = vld [vmem:[#allocation8 + $0x70] sm:$0xff]
    %v957 = vld [vmem:[#allocation8 + $0x78] sm:$0xff]
    %959 = vset.pattern.permute.xlu0 0
    %960 = vperm.xlu0 %959, %v942
    %v961 = vpop.permute.xlu0 %960
    %964 = vset.pattern.permute.xlu0 0
    %965 = vperm.xlu0 %964, %v943
    %v966 = vpop.permute.xlu0 %965
    %969 = vset.pattern.permute.xlu0 0
    %970 = vperm.xlu0 %969, %v944
    %v971 = vpop.permute.xlu0 %970
    %974 = vset.pattern.permute.xlu0 0
    %975 = vperm.xlu0 %974, %v945
    %v976 = vpop.permute.xlu0 %975
    %979 = vset.pattern.permute.xlu0 0
    %980 = vperm.xlu0 %979, %v946
    %v981 = vpop.permute.xlu0 %980
    %984 = vset.pattern.permute.xlu0 0
    %985 = vperm.xlu0 %984, %v947
    %v986 = vpop.permute.xlu0 %985
    %989 = vset.pattern.permute.xlu0 0
    %990 = vperm.xlu0 %989, %v948
    %v991 = vpop.permute.xlu0 %990
    %994 = vset.pattern.permute.xlu0 0
    %995 = vperm.xlu0 %994, %v949
    %v996 = vpop.permute.xlu0 %995
    %999 = vset.pattern.permute.xlu0 0
    %1000 = vperm.xlu0 %999, %v950
    %v1001 = vpop.permute.xlu0 %1000
    %1004 = vset.pattern.permute.xlu0 0
    %1005 = vperm.xlu0 %1004, %v951
    %v1006 = vpop.permute.xlu0 %1005
    %1009 = vset.pattern.permute.xlu0 0
    %1010 = vperm.xlu0 %1009, %v952
    %v1011 = vpop.permute.xlu0 %1010
    %1014 = vset.pattern.permute.xlu0 0
    %1015 = vperm.xlu0 %1014, %v953
    %v1016 = vpop.permute.xlu0 %1015
    %1019 = vset.pattern.permute.xlu0 0
    %1020 = vperm.xlu0 %1019, %v954
    %v1021 = vpop.permute.xlu0 %1020
    %1024 = vset.pattern.permute.xlu0 0
    %1025 = vperm.xlu0 %1024, %v955
    %v1026 = vpop.permute.xlu0 %1025
    %1029 = vset.pattern.permute.xlu0 0
    %1030 = vperm.xlu0 %1029, %v956
    %v1031 = vpop.permute.xlu0 %1030
    %1034 = vset.pattern.permute.xlu0 0
    %1035 = vperm.xlu0 %1034, %v957
    %v1036 = vpop.permute.xlu0 %1035
    %v1038 = vlaneseq
    %v1039 = vshrl.u32 %v1038, 7
    %v1040 = vsub.s32 0, %v1039
    %v1041 = vrot.slane %v930, %v1040
    %v1042 = vlaneseq
    %v1043 = vshrl.u32 %v1042, 7
    %v1044 = vsub.s32 0, %v1043
    %v1045 = vrot.slane %v931, %v1044
    %v1046 = vlaneseq
    %v1047 = vshrl.u32 %v1046, 7
    %v1048 = vsub.s32 0, %v1047
    %v1049 = vrot.slane %v932, %v1048
    %v1050 = vlaneseq
    %v1051 = vshrl.u32 %v1050, 7
    %v1052 = vsub.s32 0, %v1051
    %v1053 = vrot.slane %v933, %v1052
    %v1054 = vmul.f32 %v961, %v1041
    %v1055 = vmul.f32 %v961, %v1045
    %v1056 = vmul.f32 %v961, %v1049
    %v1057 = vmul.f32 %v961, %v1053
    %v1058 = vmul.f32 %v966, %v1041
    %v1059 = vmul.f32 %v966, %v1045
    %v1060 = vmul.f32 %v966, %v1049
    %v1061 = vmul.f32 %v966, %v1053
    %v1062 = vmul.f32 %v971, %v1041
    %v1063 = vmul.f32 %v971, %v1045
    %v1064 = vmul.f32 %v971, %v1049
    %v1065 = vmul.f32 %v971, %v1053
    %v1066 = vmul.f32 %v976, %v1041
    %v1067 = vmul.f32 %v976, %v1045
    %v1068 = vmul.f32 %v976, %v1049
    %v1069 = vmul.f32 %v976, %v1053
    %v1070 = vmul.f32 %v981, %v1041
    %v1071 = vmul.f32 %v981, %v1045
    %v1072 = vmul.f32 %v981, %v1049
    %v1073 = vmul.f32 %v981, %v1053
    %v1074 = vmul.f32 %v986, %v1041
    %v1075 = vmul.f32 %v986, %v1045
    %v1076 = vmul.f32 %v986, %v1049
    %v1077 = vmul.f32 %v986, %v1053
    %v1078 = vmul.f32 %v991, %v1041
    %v1079 = vmul.f32 %v991, %v1045
    %v1080 = vmul.f32 %v991, %v1049
    %v1081 = vmul.f32 %v991, %v1053
    %v1082 = vmul.f32 %v996, %v1041
    %v1083 = vmul.f32 %v996, %v1045
    %v1084 = vmul.f32 %v996, %v1049
    %v1085 = vmul.f32 %v996, %v1053
    %v1086 = vmul.f32 %v1001, %v1041
    %v1087 = vmul.f32 %v1001, %v1045
    %v1088 = vmul.f32 %v1001, %v1049
    %v1089 = vmul.f32 %v1001, %v1053
    %v1090 = vmul.f32 %v1006, %v1041
    %v1091 = vmul.f32 %v1006, %v1045
    %v1092 = vmul.f32 %v1006, %v1049
    %v1093 = vmul.f32 %v1006, %v1053
    %v1094 = vmul.f32 %v1011, %v1041
    %v1095 = vmul.f32 %v1011, %v1045
    %v1096 = vmul.f32 %v1011, %v1049
    %v1097 = vmul.f32 %v1011, %v1053
    %v1098 = vmul.f32 %v1016, %v1041
    %v1099 = vmul.f32 %v1016, %v1045
    %v1100 = vmul.f32 %v1016, %v1049
    %v1101 = vmul.f32 %v1016, %v1053
    %v1102 = vmul.f32 %v1021, %v1041
    %v1103 = vmul.f32 %v1021, %v1045
    %v1104 = vmul.f32 %v1021, %v1049
    %v1105 = vmul.f32 %v1021, %v1053
    %v1106 = vmul.f32 %v1026, %v1041
    %v1107 = vmul.f32 %v1026, %v1045
    %v1108 = vmul.f32 %v1026, %v1049
    %v1109 = vmul.f32 %v1026, %v1053
    %v1110 = vmul.f32 %v1031, %v1041
    %v1111 = vmul.f32 %v1031, %v1045
    %v1112 = vmul.f32 %v1031, %v1049
    %v1113 = vmul.f32 %v1031, %v1053
    %v1114 = vmul.f32 %v1036, %v1041
    %v1115 = vmul.f32 %v1036, %v1045
    %v1116 = vmul.f32 %v1036, %v1049
    %v1117 = vmul.f32 %v1036, %v1053
    %1118 = vset.pattern.permute.xlu0 1
    %1119 = vperm.xlu0 %1118, %v942
    %v1120 = vpop.permute.xlu0 %1119
    %1122 = vset.pattern.permute.xlu0 1
    %1123 = vperm.xlu0 %1122, %v943
    %v1124 = vpop.permute.xlu0 %1123
    %1126 = vset.pattern.permute.xlu0 1
    %1127 = vperm.xlu0 %1126, %v944
    %v1128 = vpop.permute.xlu0 %1127
    %1130 = vset.pattern.permute.xlu0 1
    %1131 = vperm.xlu0 %1130, %v945
    %v1132 = vpop.permute.xlu0 %1131
    %1134 = vset.pattern.permute.xlu0 1
    %1135 = vperm.xlu0 %1134, %v946
    %v1136 = vpop.permute.xlu0 %1135
    %1138 = vset.pattern.permute.xlu0 1
    %1139 = vperm.xlu0 %1138, %v947
    %v1140 = vpop.permute.xlu0 %1139
    %1142 = vset.pattern.permute.xlu0 1
    %1143 = vperm.xlu0 %1142, %v948
    %v1144 = vpop.permute.xlu0 %1143
    %1146 = vset.pattern.permute.xlu0 1
    %1147 = vperm.xlu0 %1146, %v949
    %v1148 = vpop.permute.xlu0 %1147
    %1150 = vset.pattern.permute.xlu0 1
    %1151 = vperm.xlu0 %1150, %v950
    %v1152 = vpop.permute.xlu0 %1151
    %1154 = vset.pattern.permute.xlu0 1
    %1155 = vperm.xlu0 %1154, %v951
    %v1156 = vpop.permute.xlu0 %1155
    %1158 = vset.pattern.permute.xlu0 1
    %1159 = vperm.xlu0 %1158, %v952
    %v1160 = vpop.permute.xlu0 %1159
    %1162 = vset.pattern.permute.xlu0 1
    %1163 = vperm.xlu0 %1162, %v953
    %v1164 = vpop.permute.xlu0 %1163
    %1166 = vset.pattern.permute.xlu0 1
    %1167 = vperm.xlu0 %1166, %v954
    %v1168 = vpop.permute.xlu0 %1167
    %1170 = vset.pattern.permute.xlu0 1
    %1171 = vperm.xlu0 %1170, %v955
    %v1172 = vpop.permute.xlu0 %1171
    %1174 = vset.pattern.permute.xlu0 1
    %1175 = vperm.xlu0 %1174, %v956
    %v1176 = vpop.permute.xlu0 %1175
    %1178 = vset.pattern.permute.xlu0 1
    %1179 = vperm.xlu0 %1178, %v957
    %v1180 = vpop.permute.xlu0 %1179
    %v1183 = vlaneseq
    %v1184 = vshrl.u32 %v1183, 7
    %v1185 = vsub.s32 0, %v1184
    %v1186 = vrot.slane %v941, %v1185
    %v1187 = vlaneseq
    %v1188 = vshrl.u32 %v1187, 7
    %v1189 = vsub.s32 1, %v1188
    %v1190 = vrot.slane %v941, %v1189
    %v1191 = vlaneseq
    %v1192 = vshrl.u32 %v1191, 7
    %v1193 = vsub.s32 2, %v1192
    %v1194 = vrot.slane %v941, %v1193
    %v1195 = vlaneseq
    %v1196 = vshrl.u32 %v1195, 7
    %v1197 = vsub.s32 3, %v1196
    %v1198 = vrot.slane %v941, %v1197
    %v1203 = vmul.f32 %v1120, %v1186
    %v1204 = vmul.f32 %v1120, %v1190
    %v1205 = vmul.f32 %v1120, %v1194
    %v1206 = vmul.f32 %v1120, %v1198
    %v1207 = vmul.f32 %v1124, %v1186
    %v1208 = vmul.f32 %v1124, %v1190
    %v1209 = vmul.f32 %v1124, %v1194
    %v1210 = vmul.f32 %v1124, %v1198
    %v1211 = vmul.f32 %v1128, %v1186
    %v1212 = vmul.f32 %v1128, %v1190
    %v1213 = vmul.f32 %v1128, %v1194
    %v1214 = vmul.f32 %v1128, %v1198
    %v1215 = vmul.f32 %v1132, %v1186
    %v1216 = vmul.f32 %v1132, %v1190
    %v1217 = vmul.f32 %v1132, %v1194
    %v1218 = vmul.f32 %v1132, %v1198
    %v1219 = vmul.f32 %v1136, %v1186
    %v1220 = vmul.f32 %v1136, %v1190
    %v1221 = vmul.f32 %v1136, %v1194
    %v1222 = vmul.f32 %v1136, %v1198
    %v1223 = vmul.f32 %v1140, %v1186
    %v1224 = vmul.f32 %v1140, %v1190
    %v1225 = vmul.f32 %v1140, %v1194
    %v1226 = vmul.f32 %v1140, %v1198
    %v1227 = vmul.f32 %v1144, %v1186
    %v1228 = vmul.f32 %v1144, %v1190
    %v1229 = vmul.f32 %v1144, %v1194
    %v1230 = vmul.f32 %v1144, %v1198
    %v1231 = vmul.f32 %v1148, %v1186
    %v1232 = vmul.f32 %v1148, %v1190
    %v1233 = vmul.f32 %v1148, %v1194
    %v1234 = vmul.f32 %v1148, %v1198
    %v1235 = vmul.f32 %v1152, %v1186
    %v1236 = vmul.f32 %v1152, %v1190
    %v1237 = vmul.f32 %v1152, %v1194
    %v1238 = vmul.f32 %v1152, %v1198
    %v1239 = vmul.f32 %v1156, %v1186
    %v1240 = vmul.f32 %v1156, %v1190
    %v1241 = vmul.f32 %v1156, %v1194
    %v1242 = vmul.f32 %v1156, %v1198
    %v1243 = vmul.f32 %v1160, %v1186
    %v1244 = vmul.f32 %v1160, %v1190
    %v1245 = vmul.f32 %v1160, %v1194
    %v1246 = vmul.f32 %v1160, %v1198
    %v1247 = vmul.f32 %v1164, %v1186
    %v1248 = vmul.f32 %v1164, %v1190
    %v1249 = vmul.f32 %v1164, %v1194
    %v1250 = vmul.f32 %v1164, %v1198
    %v1251 = vmul.f32 %v1168, %v1186
    %v1252 = vmul.f32 %v1168, %v1190
    %v1253 = vmul.f32 %v1168, %v1194
    %v1254 = vmul.f32 %v1168, %v1198
    %v1255 = vmul.f32 %v1172, %v1186
    %v1256 = vmul.f32 %v1172, %v1190
    %v1257 = vmul.f32 %v1172, %v1194
    %v1258 = vmul.f32 %v1172, %v1198
    %v1259 = vmul.f32 %v1176, %v1186
    %v1260 = vmul.f32 %v1176, %v1190
    %v1261 = vmul.f32 %v1176, %v1194
    %v1262 = vmul.f32 %v1176, %v1198
    %v1263 = vmul.f32 %v1180, %v1186
    %v1264 = vmul.f32 %v1180, %v1190
    %v1265 = vmul.f32 %v1180, %v1194
    %v1266 = vmul.f32 %v1180, %v1198
    %v1267 = vadd.f32 %v1054, %v1203
    %v1268 = vadd.f32 %v1055, %v1204
    %v1269 = vadd.f32 %v1056, %v1205
    %v1270 = vadd.f32 %v1057, %v1206
    %v1271 = vadd.f32 %v1058, %v1207
    %v1272 = vadd.f32 %v1059, %v1208
    %v1273 = vadd.f32 %v1060, %v1209
    %v1274 = vadd.f32 %v1061, %v1210
    %v1275 = vadd.f32 %v1062, %v1211
    %v1276 = vadd.f32 %v1063, %v1212
    %v1277 = vadd.f32 %v1064, %v1213
    %v1278 = vadd.f32 %v1065, %v1214
    %v1279 = vadd.f32 %v1066, %v1215
    %v1280 = vadd.f32 %v1067, %v1216
    %v1281 = vadd.f32 %v1068, %v1217
    %v1282 = vadd.f32 %v1069, %v1218
    %v1283 = vadd.f32 %v1070, %v1219
    %v1284 = vadd.f32 %v1071, %v1220
    %v1285 = vadd.f32 %v1072, %v1221
    %v1286 = vadd.f32 %v1073, %v1222
    %v1287 = vadd.f32 %v1074, %v1223
    %v1288 = vadd.f32 %v1075, %v1224
    %v1289 = vadd.f32 %v1076, %v1225
    %v1290 = vadd.f32 %v1077, %v1226
    %v1291 = vadd.f32 %v1078, %v1227
    %v1292 = vadd.f32 %v1079, %v1228
    %v1293 = vadd.f32 %v1080, %v1229
    %v1294 = vadd.f32 %v1081, %v1230
    %v1295 = vadd.f32 %v1082, %v1231
    %v1296 = vadd.f32 %v1083, %v1232
    %v1297 = vadd.f32 %v1084, %v1233
    %v1298 = vadd.f32 %v1085, %v1234
    %v1299 = vadd.f32 %v1086, %v1235
    %v1300 = vadd.f32 %v1087, %v1236
    %v1301 = vadd.f32 %v1088, %v1237
    %v1302 = vadd.f32 %v1089, %v1238
    %v1303 = vadd.f32 %v1090, %v1239
    %v1304 = vadd.f32 %v1091, %v1240
    %v1305 = vadd.f32 %v1092, %v1241
    %v1306 = vadd.f32 %v1093, %v1242
    %v1307 = vadd.f32 %v1094, %v1243
    %v1308 = vadd.f32 %v1095, %v1244
    %v1309 = vadd.f32 %v1096, %v1245
    %v1310 = vadd.f32 %v1097, %v1246
    %v1311 = vadd.f32 %v1098, %v1247
    %v1312 = vadd.f32 %v1099, %v1248
    %v1313 = vadd.f32 %v1100, %v1249
    %v1314 = vadd.f32 %v1101, %v1250
    %v1315 = vadd.f32 %v1102, %v1251
    %v1316 = vadd.f32 %v1103, %v1252
    %v1317 = vadd.f32 %v1104, %v1253
    %v1318 = vadd.f32 %v1105, %v1254
    %v1319 = vadd.f32 %v1106, %v1255
    %v1320 = vadd.f32 %v1107, %v1256
    %v1321 = vadd.f32 %v1108, %v1257
    %v1322 = vadd.f32 %v1109, %v1258
    %v1323 = vadd.f32 %v1110, %v1259
    %v1324 = vadd.f32 %v1111, %v1260
    %v1325 = vadd.f32 %v1112, %v1261
    %v1326 = vadd.f32 %v1113, %v1262
    %v1327 = vadd.f32 %v1114, %v1263
    %v1328 = vadd.f32 %v1115, %v1264
    %v1329 = vadd.f32 %v1116, %v1265
    %v1330 = vadd.f32 %v1117, %v1266
    %1331 = vset.pattern.permute.xlu0 2
    %1332 = vperm.xlu0 %1331, %v942
    %v1333 = vpop.permute.xlu0 %1332
    %1335 = vset.pattern.permute.xlu0 2
    %1336 = vperm.xlu0 %1335, %v943
    %v1337 = vpop.permute.xlu0 %1336
    %1339 = vset.pattern.permute.xlu0 2
    %1340 = vperm.xlu0 %1339, %v944
    %v1341 = vpop.permute.xlu0 %1340
    %1343 = vset.pattern.permute.xlu0 2
    %1344 = vperm.xlu0 %1343, %v945
    %v1345 = vpop.permute.xlu0 %1344
    %1347 = vset.pattern.permute.xlu0 2
    %1348 = vperm.xlu0 %1347, %v946
    %v1349 = vpop.permute.xlu0 %1348
    %1351 = vset.pattern.permute.xlu0 2
    %1352 = vperm.xlu0 %1351, %v947
    %v1353 = vpop.permute.xlu0 %1352
    %1355 = vset.pattern.permute.xlu0 2
    %1356 = vperm.xlu0 %1355, %v948
    %v1357 = vpop.permute.xlu0 %1356
    %1359 = vset.pattern.permute.xlu0 2
    %1360 = vperm.xlu0 %1359, %v949
    %v1361 = vpop.permute.xlu0 %1360
    %1363 = vset.pattern.permute.xlu0 2
    %1364 = vperm.xlu0 %1363, %v950
    %v1365 = vpop.permute.xlu0 %1364
    %1367 = vset.pattern.permute.xlu0 2
    %1368 = vperm.xlu0 %1367, %v951
    %v1369 = vpop.permute.xlu0 %1368
    %1371 = vset.pattern.permute.xlu0 2
    %1372 = vperm.xlu0 %1371, %v952
    %v1373 = vpop.permute.xlu0 %1372
    %1375 = vset.pattern.permute.xlu0 2
    %1376 = vperm.xlu0 %1375, %v953
    %v1377 = vpop.permute.xlu0 %1376
    %1379 = vset.pattern.permute.xlu0 2
    %1380 = vperm.xlu0 %1379, %v954
    %v1381 = vpop.permute.xlu0 %1380
    %1383 = vset.pattern.permute.xlu0 2
    %1384 = vperm.xlu0 %1383, %v955
    %v1385 = vpop.permute.xlu0 %1384
    %1387 = vset.pattern.permute.xlu0 2
    %1388 = vperm.xlu0 %1387, %v956
    %v1389 = vpop.permute.xlu0 %1388
    %1391 = vset.pattern.permute.xlu0 2
    %1392 = vperm.xlu0 %1391, %v957
    %v1393 = vpop.permute.xlu0 %1392
    %v1395 = vadd.f32 %v1267, %v1333
    %v1396 = vadd.f32 %v1268, %v1333
    %v1397 = vadd.f32 %v1269, %v1333
    %v1398 = vadd.f32 %v1270, %v1333
    %v1399 = vadd.f32 %v1271, %v1337
    %v1400 = vadd.f32 %v1272, %v1337
    %v1401 = vadd.f32 %v1273, %v1337
    %v1402 = vadd.f32 %v1274, %v1337
    %v1403 = vadd.f32 %v1275, %v1341
    %v1404 = vadd.f32 %v1276, %v1341
    %v1405 = vadd.f32 %v1277, %v1341
    %v1406 = vadd.f32 %v1278, %v1341
    %v1407 = vadd.f32 %v1279, %v1345
    %v1408 = vadd.f32 %v1280, %v1345
    %v1409 = vadd.f32 %v1281, %v1345
    %v1410 = vadd.f32 %v1282, %v1345
    %v1411 = vadd.f32 %v1283, %v1349
    %v1412 = vadd.f32 %v1284, %v1349
    %v1413 = vadd.f32 %v1285, %v1349
    %v1414 = vadd.f32 %v1286, %v1349
    %v1415 = vadd.f32 %v1287, %v1353
    %v1416 = vadd.f32 %v1288, %v1353
    %v1417 = vadd.f32 %v1289, %v1353
    %v1418 = vadd.f32 %v1290, %v1353
    %v1419 = vadd.f32 %v1291, %v1357
    %v1420 = vadd.f32 %v1292, %v1357
    %v1421 = vadd.f32 %v1293, %v1357
    %v1422 = vadd.f32 %v1294, %v1357
    %v1423 = vadd.f32 %v1295, %v1361
    %v1424 = vadd.f32 %v1296, %v1361
    %v1425 = vadd.f32 %v1297, %v1361
    %v1426 = vadd.f32 %v1298, %v1361
    %v1427 = vadd.f32 %v1299, %v1365
    %v1428 = vadd.f32 %v1300, %v1365
    %v1429 = vadd.f32 %v1301, %v1365
    %v1430 = vadd.f32 %v1302, %v1365
    %v1431 = vadd.f32 %v1303, %v1369
    %v1432 = vadd.f32 %v1304, %v1369
    %v1433 = vadd.f32 %v1305, %v1369
    %v1434 = vadd.f32 %v1306, %v1369
    %v1435 = vadd.f32 %v1307, %v1373
    %v1436 = vadd.f32 %v1308, %v1373
    %v1437 = vadd.f32 %v1309, %v1373
    %v1438 = vadd.f32 %v1310, %v1373
    %v1439 = vadd.f32 %v1311, %v1377
    %v1440 = vadd.f32 %v1312, %v1377
    %v1441 = vadd.f32 %v1313, %v1377
    %v1442 = vadd.f32 %v1314, %v1377
    %v1443 = vadd.f32 %v1315, %v1381
    %v1444 = vadd.f32 %v1316, %v1381
    %v1445 = vadd.f32 %v1317, %v1381
    %v1446 = vadd.f32 %v1318, %v1381
    %v1447 = vadd.f32 %v1319, %v1385
    %v1448 = vadd.f32 %v1320, %v1385
    %v1449 = vadd.f32 %v1321, %v1385
    %v1450 = vadd.f32 %v1322, %v1385
    %v1451 = vadd.f32 %v1323, %v1389
    %v1452 = vadd.f32 %v1324, %v1389
    %v1453 = vadd.f32 %v1325, %v1389
    %v1454 = vadd.f32 %v1326, %v1389
    %v1455 = vadd.f32 %v1327, %v1393
    %v1456 = vadd.f32 %v1328, %v1393
    %v1457 = vadd.f32 %v1329, %v1393
    %v1458 = vadd.f32 %v1330, %v1393
    %v1459 = vmax.f32 %v1395, 0.0
    %v1460 = vmax.f32 %v1396, 0.0
    %v1461 = vmax.f32 %v1397, 0.0
    %v1462 = vmax.f32 %v1398, 0.0
    %v1463 = vmax.f32 %v1399, 0.0
    %v1464 = vmax.f32 %v1400, 0.0
    %v1465 = vmax.f32 %v1401, 0.0
    %v1466 = vmax.f32 %v1402, 0.0
    %v1467 = vmax.f32 %v1403, 0.0
    %v1468 = vmax.f32 %v1404, 0.0
    %v1469 = vmax.f32 %v1405, 0.0
    %v1470 = vmax.f32 %v1406, 0.0
    %v1471 = vmax.f32 %v1407, 0.0
    %v1472 = vmax.f32 %v1408, 0.0
    %v1473 = vmax.f32 %v1409, 0.0
    %v1474 = vmax.f32 %v1410, 0.0
    %v1475 = vmax.f32 %v1411, 0.0
    %v1476 = vmax.f32 %v1412, 0.0
    %v1477 = vmax.f32 %v1413, 0.0
    %v1478 = vmax.f32 %v1414, 0.0
    %v1479 = vmax.f32 %v1415, 0.0
    %v1480 = vmax.f32 %v1416, 0.0
    %v1481 = vmax.f32 %v1417, 0.0
    %v1482 = vmax.f32 %v1418, 0.0
    %v1483 = vmax.f32 %v1419, 0.0
    %v1484 = vmax.f32 %v1420, 0.0
    %v1485 = vmax.f32 %v1421, 0.0
    %v1486 = vmax.f32 %v1422, 0.0
    %v1487 = vmax.f32 %v1423, 0.0
    %v1488 = vmax.f32 %v1424, 0.0
    %v1489 = vmax.f32 %v1425, 0.0
    %v1490 = vmax.f32 %v1426, 0.0
    %v1491 = vmax.f32 %v1427, 0.0
    %v1492 = vmax.f32 %v1428, 0.0
    %v1493 = vmax.f32 %v1429, 0.0
    %v1494 = vmax.f32 %v1430, 0.0
    %v1495 = vmax.f32 %v1431, 0.0
    %v1496 = vmax.f32 %v1432, 0.0
    %v1497 = vmax.f32 %v1433, 0.0
    %v1498 = vmax.f32 %v1434, 0.0
    %v1499 = vmax.f32 %v1435, 0.0
    %v1500 = vmax.f32 %v1436, 0.0
    %v1501 = vmax.f32 %v1437, 0.0
    %v1502 = vmax.f32 %v1438, 0.0
    %v1503 = vmax.f32 %v1439, 0.0
    %v1504 = vmax.f32 %v1440, 0.0
    %v1505 = vmax.f32 %v1441, 0.0
    %v1506 = vmax.f32 %v1442, 0.0
    %v1507 = vmax.f32 %v1443, 0.0
    %v1508 = vmax.f32 %v1444, 0.0
    %v1509 = vmax.f32 %v1445, 0.0
    %v1510 = vmax.f32 %v1446, 0.0
    %v1511 = vmax.f32 %v1447, 0.0
    %v1512 = vmax.f32 %v1448, 0.0
    %v1513 = vmax.f32 %v1449, 0.0
    %v1514 = vmax.f32 %v1450, 0.0
    %v1515 = vmax.f32 %v1451, 0.0
    %v1516 = vmax.f32 %v1452, 0.0
    %v1517 = vmax.f32 %v1453, 0.0
    %v1518 = vmax.f32 %v1454, 0.0
    %v1519 = vmax.f32 %v1455, 0.0
    %v1520 = vmax.f32 %v1456, 0.0
    %v1521 = vmax.f32 %v1457, 0.0
    %v1522 = vmax.f32 %v1458, 0.0
    %1523 = vset.pattern.permute.xlu0 3
    %1524 = vperm.xlu0 %1523, %v942
    %v1525 = vpop.permute.xlu0 %1524
    %1527 = vset.pattern.permute.xlu0 3
    %1528 = vperm.xlu0 %1527, %v943
    %v1529 = vpop.permute.xlu0 %1528
    %1531 = vset.pattern.permute.xlu0 3
    %1532 = vperm.xlu0 %1531, %v944
    %v1533 = vpop.permute.xlu0 %1532
    %1535 = vset.pattern.permute.xlu0 3
    %1536 = vperm.xlu0 %1535, %v945
    %v1537 = vpop.permute.xlu0 %1536
    %1539 = vset.pattern.permute.xlu0 3
    %1540 = vperm.xlu0 %1539, %v946
    %v1541 = vpop.permute.xlu0 %1540
    %1543 = vset.pattern.permute.xlu0 3
    %1544 = vperm.xlu0 %1543, %v947
    %v1545 = vpop.permute.xlu0 %1544
    %1547 = vset.pattern.permute.xlu0 3
    %1548 = vperm.xlu0 %1547, %v948
    %v1549 = vpop.permute.xlu0 %1548
    %1551 = vset.pattern.permute.xlu0 3
    %1552 = vperm.xlu0 %1551, %v949
    %v1553 = vpop.permute.xlu0 %1552
    %1555 = vset.pattern.permute.xlu0 3
    %1556 = vperm.xlu0 %1555, %v950
    %v1557 = vpop.permute.xlu0 %1556
    %1559 = vset.pattern.permute.xlu0 3
    %1560 = vperm.xlu0 %1559, %v951
    %v1561 = vpop.permute.xlu0 %1560
    %1563 = vset.pattern.permute.xlu0 3
    %1564 = vperm.xlu0 %1563, %v952
    %v1565 = vpop.permute.xlu0 %1564
    %1567 = vset.pattern.permute.xlu0 3
    %1568 = vperm.xlu0 %1567, %v953
    %v1569 = vpop.permute.xlu0 %1568
    %1571 = vset.pattern.permute.xlu0 3
    %1572 = vperm.xlu0 %1571, %v954
    %v1573 = vpop.permute.xlu0 %1572
    %1575 = vset.pattern.permute.xlu0 3
    %1576 = vperm.xlu0 %1575, %v955
    %v1577 = vpop.permute.xlu0 %1576
    %1579 = vset.pattern.permute.xlu0 3
    %1580 = vperm.xlu0 %1579, %v956
    %v1581 = vpop.permute.xlu0 %1580
    %1583 = vset.pattern.permute.xlu0 3
    %1584 = vperm.xlu0 %1583, %v957
    %v1585 = vpop.permute.xlu0 %1584
    %v1587 = vmul.f32 %v1525, %v1459
    %v1588 = vmul.f32 %v1525, %v1460
    %v1589 = vmul.f32 %v1525, %v1461
    %v1590 = vmul.f32 %v1525, %v1462
    %v1591 = vmul.f32 %v1529, %v1463
    %v1592 = vmul.f32 %v1529, %v1464
    %v1593 = vmul.f32 %v1529, %v1465
    %v1594 = vmul.f32 %v1529, %v1466
    %v1595 = vmul.f32 %v1533, %v1467
    %v1596 = vmul.f32 %v1533, %v1468
    %v1597 = vmul.f32 %v1533, %v1469
    %v1598 = vmul.f32 %v1533, %v1470
    %v1599 = vmul.f32 %v1537, %v1471
    %v1600 = vmul.f32 %v1537, %v1472
    %v1601 = vmul.f32 %v1537, %v1473
    %v1602 = vmul.f32 %v1537, %v1474
    %v1603 = vmul.f32 %v1541, %v1475
    %v1604 = vmul.f32 %v1541, %v1476
    %v1605 = vmul.f32 %v1541, %v1477
    %v1606 = vmul.f32 %v1541, %v1478
    %v1607 = vmul.f32 %v1545, %v1479
    %v1608 = vmul.f32 %v1545, %v1480
    %v1609 = vmul.f32 %v1545, %v1481
    %v1610 = vmul.f32 %v1545, %v1482
    %v1611 = vmul.f32 %v1549, %v1483
    %v1612 = vmul.f32 %v1549, %v1484
    %v1613 = vmul.f32 %v1549, %v1485
    %v1614 = vmul.f32 %v1549, %v1486
    %v1615 = vmul.f32 %v1553, %v1487
    %v1616 = vmul.f32 %v1553, %v1488
    %v1617 = vmul.f32 %v1553, %v1489
    %v1618 = vmul.f32 %v1553, %v1490
    %v1619 = vmul.f32 %v1557, %v1491
    %v1620 = vmul.f32 %v1557, %v1492
    %v1621 = vmul.f32 %v1557, %v1493
    %v1622 = vmul.f32 %v1557, %v1494
    %v1623 = vmul.f32 %v1561, %v1495
    %v1624 = vmul.f32 %v1561, %v1496
    %v1625 = vmul.f32 %v1561, %v1497
    %v1626 = vmul.f32 %v1561, %v1498
    %v1627 = vmul.f32 %v1565, %v1499
    %v1628 = vmul.f32 %v1565, %v1500
    %v1629 = vmul.f32 %v1565, %v1501
    %v1630 = vmul.f32 %v1565, %v1502
    %v1631 = vmul.f32 %v1569, %v1503
    %v1632 = vmul.f32 %v1569, %v1504
    %v1633 = vmul.f32 %v1569, %v1505
    %v1634 = vmul.f32 %v1569, %v1506
    %v1635 = vmul.f32 %v1573, %v1507
    %v1636 = vmul.f32 %v1573, %v1508
    %v1637 = vmul.f32 %v1573, %v1509
    %v1638 = vmul.f32 %v1573, %v1510
    %v1639 = vmul.f32 %v1577, %v1511
    %v1640 = vmul.f32 %v1577, %v1512
    %v1641 = vmul.f32 %v1577, %v1513
    %v1642 = vmul.f32 %v1577, %v1514
    %v1643 = vmul.f32 %v1581, %v1515
    %v1644 = vmul.f32 %v1581, %v1516
    %v1645 = vmul.f32 %v1581, %v1517
    %v1646 = vmul.f32 %v1581, %v1518
    %v1647 = vmul.f32 %v1585, %v1519
    %v1648 = vmul.f32 %v1585, %v1520
    %v1649 = vmul.f32 %v1585, %v1521
    %v1650 = vmul.f32 %v1585, %v1522
    %v1651 = vadd.f32 %v1587, %v1591
    %v1652 = vadd.f32 %v1651, %v1595
    %v1653 = vadd.f32 %v1652, %v1599
    %v1654 = vadd.f32 %v1653, %v1603
    %v1655 = vadd.f32 %v1654, %v1607
    %v1656 = vadd.f32 %v1655, %v1611
    %v1657 = vadd.f32 %v1656, %v1615
    %v1658 = vadd.f32 %v1657, %v1619
    %v1659 = vadd.f32 %v1658, %v1623
    %v1660 = vadd.f32 %v1659, %v1627
    %v1661 = vadd.f32 %v1660, %v1631
    %v1662 = vadd.f32 %v1661, %v1635
    %v1663 = vadd.f32 %v1662, %v1639
    %v1664 = vadd.f32 %v1663, %v1643
    %v1665 = vadd.f32 %v1664, %v1647
    %v1666 = vrot.slane %v1665, 4
    %v1667 = vadd.f32 %v1665, %v1666
    %v1668 = vrot.slane %v1667, 2
    %v1669 = vadd.f32 %v1667, %v1668
    %v1670 = vrot.slane %v1669, 1
    %v1671 = vadd.f32 %v1669, %v1670
    %v1672 = vadd.f32 %v1588, %v1592
    %v1673 = vadd.f32 %v1672, %v1596
    %v1674 = vadd.f32 %v1673, %v1600
    %v1675 = vadd.f32 %v1674, %v1604
    %v1676 = vadd.f32 %v1675, %v1608
    %v1677 = vadd.f32 %v1676, %v1612
    %v1678 = vadd.f32 %v1677, %v1616
    %v1679 = vadd.f32 %v1678, %v1620
    %v1680 = vadd.f32 %v1679, %v1624
    %v1681 = vadd.f32 %v1680, %v1628
    %v1682 = vadd.f32 %v1681, %v1632
    %v1683 = vadd.f32 %v1682, %v1636
    %v1684 = vadd.f32 %v1683, %v1640
    %v1685 = vadd.f32 %v1684, %v1644
    %v1686 = vadd.f32 %v1685, %v1648
    %v1687 = vrot.slane %v1686, 4
    %v1688 = vadd.f32 %v1686, %v1687
    %v1689 = vrot.slane %v1688, 2
    %v1690 = vadd.f32 %v1688, %v1689
    %v1691 = vrot.slane %v1690, 1
    %v1692 = vadd.f32 %v1690, %v1691
    %v1693 = vadd.f32 %v1589, %v1593
    %v1694 = vadd.f32 %v1693, %v1597
    %v1695 = vadd.f32 %v1694, %v1601
    %v1696 = vadd.f32 %v1695, %v1605
    %v1697 = vadd.f32 %v1696, %v1609
    %v1698 = vadd.f32 %v1697, %v1613
    %v1699 = vadd.f32 %v1698, %v1617
    %v1700 = vadd.f32 %v1699, %v1621
    %v1701 = vadd.f32 %v1700, %v1625
    %v1702 = vadd.f32 %v1701, %v1629
    %v1703 = vadd.f32 %v1702, %v1633
    %v1704 = vadd.f32 %v1703, %v1637
    %v1705 = vadd.f32 %v1704, %v1641
    %v1706 = vadd.f32 %v1705, %v1645
    %v1707 = vadd.f32 %v1706, %v1649
    %v1708 = vrot.slane %v1707, 4
    %v1709 = vadd.f32 %v1707, %v1708
    %v1710 = vrot.slane %v1709, 2
    %v1711 = vadd.f32 %v1709, %v1710
    %v1712 = vrot.slane %v1711, 1
    %v1713 = vadd.f32 %v1711, %v1712
    %v1714 = vadd.f32 %v1590, %v1594
    %v1715 = vadd.f32 %v1714, %v1598
    %v1716 = vadd.f32 %v1715, %v1602
    %v1717 = vadd.f32 %v1716, %v1606
    %v1718 = vadd.f32 %v1717, %v1610
    %v1719 = vadd.f32 %v1718, %v1614
    %v1720 = vadd.f32 %v1719, %v1618
    %v1721 = vadd.f32 %v1720, %v1622
    %v1722 = vadd.f32 %v1721, %v1626
    %v1723 = vadd.f32 %v1722, %v1630
    %v1724 = vadd.f32 %v1723, %v1634
    %v1725 = vadd.f32 %v1724, %v1638
    %v1726 = vadd.f32 %v1725, %v1642
    %v1727 = vadd.f32 %v1726, %v1646
    %v1728 = vadd.f32 %v1727, %v1650
    %v1729 = vrot.slane %v1728, 4
    %v1730 = vadd.f32 %v1728, %v1729
    %v1731 = vrot.slane %v1730, 2
    %v1732 = vadd.f32 %v1730, %v1731
    %v1733 = vrot.slane %v1732, 1
    %v1734 = vadd.f32 %v1732, %v1733
    %v1735 = vstv %s936
    %v1736 = vadd.f32 %v1671, %v1735
    %v1737 = vadd.f32 %v1692, %v1735
    %v1738 = vadd.f32 %v1713, %v1735
    %v1739 = vadd.f32 %v1734, %v1735
    %v1744 = vcombine.low %v1736, %v1737
    %v1745 = vcombine.low %v1738, %v1739
    %v1747 = vunpack.c.l.s4 1966171168
    %v1748 = vunpack.c.0.s8 %v1747
    %v1749 = vlaneseq
    %v1750 = vshrl.u32 %v1749, 7
    %v1751 = vsub.s32 %v1748, %v1750
    %v1752 = vrot.slane %v1744, %v1751
    %v1754 = vunpack.c.l.s4 1966171168
    %v1755 = vunpack.c.0.s8 %v1754
    %v1756 = vlaneseq
    %v1757 = vshrl.u32 %v1756, 7
    %v1758 = vsub.s32 %v1755, %v1757
    %v1759 = vrot.slane %v1745, %v1758
    %v1760 = vcombine.low %v1752, %v1759
    %v1762 = vunpack.c.l.s4 1966171168
    %v1763 = vunpack.c.0.s8 %v1762
    %v1764 = vlaneseq
    %v1765 = vshrl.u32 %v1764, 7
    %v1766 = vsub.s32 %v1763, %v1765
    %v1767 = vrot.slane %v1760, %v1766
    %v1769 = vlaneseq
    %vm1770 = vcmp.ge.s32.totalorder %v1769, 0
    %vm1771 = vcmp.lt.s32.totalorder %v1769, 512
    %vm1772 = vmand %vm1770, %vm1771
    %1773 = vst.msk [vmem:[#allocation10] sm:$0xf] %vm1772, %v1767
    // Predicated region
    $region38: #{image_network.1} parent=1 // pred_check
      _
    $region39: #{image_network.1} parent=1 // pred_check_branch
      %1775 = sbr.rel (0) target = $region41
    $region40: #{image_network.1} parent=1 // pred_region
      %s1777 = ssub.s32 64, 64
      %1778 = vsyncadd [#allocation4], %s1777
      %s1780 = sshll.u32 [#allocation10], 4
      %s1781 = int_to_ptr.vmem [resolvable:$true] %s1780
      %1783 = dma.vmem_to_hbm [thread:$0]  %s1781, 64, %s5, [#allocation4]
    $region41: #{image_network.1} parent=1 // pred_fallthru
      _
    // Predicated region
    $region42: #{image_network.1} parent=1 // pred_check
      _
    $region43: #{image_network.1} parent=1 // pred_check_branch
      %1785 = sbr.rel (0) target = $region45
    $region44: #{image_network.1} parent=1 // pred_region
      %1786 = dma.done [#allocation4], 64
    $region45: #{image_network.1} parent=1 // pred_fallthru
      _
    %1787 = vsyncpa [#allocation3], 1
    %1788 = vsyncpa [#allocation7], 1
    %1789 = vsyncpa [#allocation4], 1
    %1790 = vsyncpa [#allocation5], 1

</llo_original>
